<compile_context>
chip_gen: v6e
topology: v6e:2x2x1
jax: 0.10.0
libtpu: 0.0.40
codegen_flags: <defaults>
</compile_context>

<pallas_src>
import math
import jax
import jax.numpy as jnp
from jax.experimental import pallas as pl
from jax.experimental.pallas import tpu as pltpu

MOD_HIDDEN = (32, 64, 128, 256, 256)   # fusilli ParentFusionModel.set_mod{1,2}_layers
N_MOD_LAYERS = len(MOD_HIDDEN)
PRED_OUT = 1                           # regression / binary head


# ----------------------------------------------------------------------------
# Kernel
# ----------------------------------------------------------------------------
def tabular_decision_kernel(*refs):
    """Fused forward pass over one batch tile.

    Ref order:
      x_ref  : (tb, d1 + d2) f32, the two modalities concatenated on the lane axis
      6 x (W bf16, b f32)    : 5 packed modality layers + 1 packed head first layer,
                               all block-diagonal over (mod1 | mod2)
      fw_ref : (1, 256) f32  : both Linear(128,1) heads + 0.5-mean folded into one row
      fb_ref : (1, 1)   f32  : folded bias
      out_ref: (tb, 1)  f32
    """
    x_ref = refs[0]
    out_ref = refs[-1]
    params = refs[1:-1]

    # 6 packed Linear -> ReLU layers: bf16 MXU operands, f32 accumulate / bias / ReLU.
    h = x_ref[...]
    for i in range(N_MOD_LAYERS + 1):
        w_ref, b_ref = params[2 * i], params[2 * i + 1]
        acc = jnp.dot(h.astype(jnp.bfloat16), w_ref[...],
                      preferred_element_type=jnp.float32) + b_ref[...]
        h = jnp.maximum(acc, 0.0)

    # Final Linear(128->1) x2 + 0.5-mean fusion as VPU multiply + lane reduce.
    # h == [relu_head1 | relu_head2], shape (tb, 256).
    fw_ref, fb_ref = params[-2], params[-1]
    out = jnp.sum(h * fw_ref[...], axis=-1, keepdims=True) + fb_ref[...]
    out_ref[...] = out.astype(out_ref.dtype)


# ----------------------------------------------------------------------------
# Wrapper
# ----------------------------------------------------------------------------
def tabular_decision_forward(x1, x2, packed_params, *, tile_batch=256):
    # Concatenate modalities along the feature (lane) axis; weights are block-diagonal.
    x = jnp.concatenate([x1.astype(jnp.float32), x2.astype(jnp.float32)], axis=1)
    batch, d_in = x.shape

    tb = min(tile_batch, batch)
    pad = (-batch) % tb
    if pad:
        x = jnp.pad(x, ((0, pad), (0, 0)))
    padded = batch + pad
    grid = (pl.cdiv(padded, tb),)

    x_spec = pl.BlockSpec((tb, d_in), lambda i: (i, 0))
    out_spec = pl.BlockSpec((tb, PRED_OUT), lambda i: (i, 0))
    # Weights/biases: full-array blocks with constant index_map -> stay VMEM resident
    # across batch tiles (no re-fetch).
    param_specs = [pl.BlockSpec(p.shape, lambda i: (0, 0)) for p in packed_params]

    out = pl.pallas_call(
        tabular_decision_kernel,
        out_shape=jax.ShapeDtypeStruct((padded, PRED_OUT), jnp.float32),
        grid=grid,
        in_specs=[x_spec] + param_specs,
        out_specs=out_spec,
        compiler_params=pltpu.CompilerParams(
            dimension_semantics=("parallel",),
        ),
    )(x, *packed_params)
    return out[:batch]


# ----------------------------------------------------------------------------
# Parameter construction (PyTorch nn.Linear default init), packing, reference
# ----------------------------------------------------------------------------
def _init_linear(key, fan_in, fan_out):
    """PyTorch nn.Linear default init: U(-1/sqrt(fan_in), 1/sqrt(fan_in))."""
    kw, kb = jax.random.split(key)
    bound = 1.0 / math.sqrt(fan_in)
    w = jax.random.uniform(kw, (fan_in, fan_out), jnp.float32, -bound, bound)
    b = jax.random.uniform(kb, (1, fan_out), jnp.float32, -bound, bound)
    return w, b


def make_raw_params(key, mod1_dim, mod2_dim):
    n = N_MOD_LAYERS
    keys = jax.random.split(key, 2 * n + 4)
    ki = iter(range(len(keys)))
    dims1 = (mod1_dim,) + MOD_HIDDEN
    mod1 = [_init_linear(keys[next(ki)], dims1[i], dims1[i + 1]) for i in range(n)]
    dims2 = (mod2_dim,) + MOD_HIDDEN
    mod2 = [_init_linear(keys[next(ki)], dims2[i], dims2[i + 1]) for i in range(n)]
    fused = MOD_HIDDEN[-1]
    head1 = [_init_linear(keys[next(ki)], fused, fused // 2),
             _init_linear(keys[next(ki)], fused // 2, PRED_OUT)]
    head2 = [_init_linear(keys[next(ki)], fused, fused // 2),
             _init_linear(keys[next(ki)], fused // 2, PRED_OUT)]
    return {"mod1": mod1, "mod2": mod2, "head1": head1, "head2": head2}


def _blockdiag(w1, w2):
    i1, o1 = w1.shape
    i2, o2 = w2.shape
    top = jnp.concatenate([w1, jnp.zeros((i1, o2), w1.dtype)], axis=1)
    bot = jnp.concatenate([jnp.zeros((i2, o1), w2.dtype), w2], axis=1)
    return jnp.concatenate([top, bot], axis=0)


def pack_params(raw):
    """Build the packed operand list consumed by the kernel."""
    packed = []
    # 5 modality layers, block-diagonal over (mod1 | mod2); weights -> bf16, biases -> f32.
    for (w1, b1), (w2, b2) in zip(raw["mod1"], raw["mod2"]):
        packed.append(_blockdiag(w1, w2).astype(jnp.bfloat16))
        packed.append(jnp.concatenate([b1, b2], axis=1))
    # Head first layers (Linear(256,128) each), block-diagonal -> (512, 256).
    (h1w1, h1b1), (h1w2, h1b2) = raw["head1"]
    (h2w1, h2b1), (h2w2, h2b2) = raw["head2"]
    packed.append(_blockdiag(h1w1, h2w1).astype(jnp.bfloat16))
    packed.append(jnp.concatenate([h1b1, h2b1], axis=1))
    # Head second layers + 0.5-mean fusion folded into a single (1, 256) f32 row.
    fw_row = 0.5 * jnp.concatenate([h1w2, h2w2], axis=0).T    # (1, 256)
    fb = 0.5 * (h1b2 + h2b2)                                  # (1, 1)
    packed.append(fw_row.astype(jnp.float32))
    packed.append(fb.astype(jnp.float32))
    return packed


def reference_forward(x1, x2, raw):
    """Pure-JAX reference mirroring the PyTorch forward (with the same bf16 weight rounding)."""
    def lin_bf16(h, w, b):
        return jnp.dot(h.astype(jnp.bfloat16), w.astype(jnp.bfloat16),
                       preferred_element_type=jnp.float32) + b

    h1 = x1.astype(jnp.float32)
    for w, b in raw["mod1"]:
        h1 = jax.nn.relu(lin_bf16(h1, w, b))
    h2 = x2.astype(jnp.float32)
    for w, b in raw["mod2"]:
        h2 = jax.nn.relu(lin_bf16(h2, w, b))

    (h1w1, h1b1), (h1w2, h1b2) = raw["head1"]
    (h2w1, h2b1), (h2w2, h2b2) = raw["head2"]
    r1 = jax.nn.relu(lin_bf16(h1, h1w1, h1b1))
    r2 = jax.nn.relu(lin_bf16(h2, h2w1, h2b1))
    p1 = jnp.dot(r1, h1w2, preferred_element_type=jnp.float32) + h1b2   # final layers stay f32
    p2 = jnp.dot(r2, h2w2, preferred_element_type=jnp.float32) + h2b2
    return 0.5 * (p1 + p2)       # torch.mean(torch.stack([p1, p2]), dim=0)


if __name__ == "__main__":
    # Small shapes: tabular data => (batch, n_features) per modality.
    batch, mod1_dim, mod2_dim = 8, 16, 24

    key = jax.random.PRNGKey(0)
    kx1, kx2, kp = jax.random.split(key, 3)
    x1 = jax.random.normal(kx1, (batch, mod1_dim), jnp.float32)
    x2 = jax.random.normal(kx2, (batch, mod2_dim), jnp.float32)

    raw_params = make_raw_params(kp, mod1_dim, mod2_dim)
    packed_params = pack_params(raw_params)

    out = tabular_decision_forward(x1, x2, packed_params)
    out = jax.block_until_ready(out)

    ref = reference_forward(x1, x2, raw_params)
    assert out.shape == (batch, PRED_OUT), out.shape
    assert jnp.allclose(out, ref, atol=5e-3, rtol=5e-3), (out, ref)

    print("KERNEL_OK")
</pallas_src>

<mosaic_0001>
module attributes {stable_mosaic.version = 11 : i64} {
  func.func @tabular_decision_kernel(%arg0: i32, %arg1: memref<8x40xf32, #tpu.memory_space<vmem>>, %arg2: memref<40x64xbf16, #tpu.memory_space<vmem>>, %arg3: memref<1x64xf32, #tpu.memory_space<vmem>>, %arg4: memref<64x128xbf16, #tpu.memory_space<vmem>>, %arg5: memref<1x128xf32, #tpu.memory_space<vmem>>, %arg6: memref<128x256xbf16, #tpu.memory_space<vmem>>, %arg7: memref<1x256xf32, #tpu.memory_space<vmem>>, %arg8: memref<256x512xbf16, #tpu.memory_space<vmem>>, %arg9: memref<1x512xf32, #tpu.memory_space<vmem>>, %arg10: memref<512x512xbf16, #tpu.memory_space<vmem>>, %arg11: memref<1x512xf32, #tpu.memory_space<vmem>>, %arg12: memref<512x256xbf16, #tpu.memory_space<vmem>>, %arg13: memref<1x256xf32, #tpu.memory_space<vmem>>, %arg14: memref<1x256xf32, #tpu.memory_space<vmem>>, %arg15: memref<1x1xf32, #tpu.memory_space<vmem>>, %arg16: memref<8x1xf32, #tpu.memory_space<vmem>>) attributes {dimension_semantics = [#tpu.dimension_semantics<parallel>], iteration_bounds = array<i64: 1>, scalar_prefetch = 0 : i64, scratch_operands = 0 : i64, tpu.core_type = #tpu.core_type<tc>, window_params = [{transform_indices = @transform_0, window_bounds = array<i64: 8, 40>}, {pipeline_mode = #tpu.pipeline_mode<synchronous>, transform_indices = @transform_1, window_bounds = array<i64: 40, 64>}, {pipeline_mode = #tpu.pipeline_mode<synchronous>, transform_indices = @transform_2, window_bounds = array<i64: 1, 64>}, {pipeline_mode = #tpu.pipeline_mode<synchronous>, transform_indices = @transform_3, window_bounds = array<i64: 64, 128>}, {pipeline_mode = #tpu.pipeline_mode<synchronous>, transform_indices = @transform_4, window_bounds = array<i64: 1, 128>}, {pipeline_mode = #tpu.pipeline_mode<synchronous>, transform_indices = @transform_5, window_bounds = array<i64: 128, 256>}, {pipeline_mode = #tpu.pipeline_mode<synchronous>, transform_indices = @transform_6, window_bounds = array<i64: 1, 256>}, {pipeline_mode = #tpu.pipeline_mode<synchronous>, transform_indices = @transform_7, window_bounds = array<i64: 256, 512>}, {pipeline_mode = #tpu.pipeline_mode<synchronous>, transform_indices = @transform_8, window_bounds = array<i64: 1, 512>}, {pipeline_mode = #tpu.pipeline_mode<synchronous>, transform_indices = @transform_9, window_bounds = array<i64: 512, 512>}, {pipeline_mode = #tpu.pipeline_mode<synchronous>, transform_indices = @transform_10, window_bounds = array<i64: 1, 512>}, {pipeline_mode = #tpu.pipeline_mode<synchronous>, transform_indices = @transform_11, window_bounds = array<i64: 512, 256>}, {pipeline_mode = #tpu.pipeline_mode<synchronous>, transform_indices = @transform_12, window_bounds = array<i64: 1, 256>}, {pipeline_mode = #tpu.pipeline_mode<synchronous>, transform_indices = @transform_13, window_bounds = array<i64: 1, 256>}, {pipeline_mode = #tpu.pipeline_mode<synchronous>, transform_indices = @transform_14, window_bounds = array<i64: 1, 1>}, {transform_indices = @transform_15, window_bounds = array<i64: 8, 1>}]} {
    %c0 = arith.constant 0 : index
    %c0_0 = arith.constant 0 : index
    %0 = vector.load %arg1[%c0, %c0_0] : memref<8x40xf32, #tpu.memory_space<vmem>>, vector<8x40xf32>
    %1 = arith.truncf %0 : vector<8x40xf32> to vector<8x40xbf16>
    %c0_1 = arith.constant 0 : index
    %c0_2 = arith.constant 0 : index
    %2 = vector.load %arg2[%c0_1, %c0_2] : memref<40x64xbf16, #tpu.memory_space<vmem>>, vector<40x64xbf16>
    %cst = arith.constant dense<0.000000e+00> : vector<8x64xf32>
    %3 = tpu.matmul %1, %2, %cst {dimension_numbers = #tpu.dot_dimension_numbers<[1], [0], [0], [1], [0, 0, 1, 1], [], []>} : vector<8x40xbf16>, vector<40x64xbf16>, vector<8x64xf32> -> vector<8x64xf32>
    %c0_3 = arith.constant 0 : index
    %c0_4 = arith.constant 0 : index
    %4 = vector.load %arg3[%c0_3, %c0_4] : memref<1x64xf32, #tpu.memory_space<vmem>>, vector<1x64xf32>
    %5 = vector.broadcast %4 : vector<1x64xf32> to vector<8x64xf32>
    %6 = arith.addf %3, %5 : vector<8x64xf32>
    %cst_5 = arith.constant 0.000000e+00 : f32
    %7 = vector.broadcast %cst_5 : f32 to vector<8x64xf32>
    %8 = arith.maximumf %6, %7 : vector<8x64xf32>
    %9 = arith.truncf %8 : vector<8x64xf32> to vector<8x64xbf16>
    %c0_6 = arith.constant 0 : index
    %c0_7 = arith.constant 0 : index
    %10 = vector.load %arg4[%c0_6, %c0_7] : memref<64x128xbf16, #tpu.memory_space<vmem>>, vector<64x128xbf16>
    %cst_8 = arith.constant dense<0.000000e+00> : vector<8x128xf32>
    %11 = tpu.matmul %9, %10, %cst_8 {dimension_numbers = #tpu.dot_dimension_numbers<[1], [0], [0], [1], [0, 0, 1, 1], [], []>} : vector<8x64xbf16>, vector<64x128xbf16>, vector<8x128xf32> -> vector<8x128xf32>
    %c0_9 = arith.constant 0 : index
    %c0_10 = arith.constant 0 : index
    %12 = vector.load %arg5[%c0_9, %c0_10] : memref<1x128xf32, #tpu.memory_space<vmem>>, vector<1x128xf32>
    %13 = vector.broadcast %12 : vector<1x128xf32> to vector<8x128xf32>
    %14 = arith.addf %11, %13 : vector<8x128xf32>
    %cst_11 = arith.constant 0.000000e+00 : f32
    %15 = vector.broadcast %cst_11 : f32 to vector<8x128xf32>
    %16 = arith.maximumf %14, %15 : vector<8x128xf32>
    %17 = arith.truncf %16 : vector<8x128xf32> to vector<8x128xbf16>
    %c0_12 = arith.constant 0 : index
    %c0_13 = arith.constant 0 : index
    %18 = vector.load %arg6[%c0_12, %c0_13] : memref<128x256xbf16, #tpu.memory_space<vmem>>, vector<128x256xbf16>
    %cst_14 = arith.constant dense<0.000000e+00> : vector<8x256xf32>
    %19 = tpu.matmul %17, %18, %cst_14 {dimension_numbers = #tpu.dot_dimension_numbers<[1], [0], [0], [1], [0, 0, 1, 1], [], []>} : vector<8x128xbf16>, vector<128x256xbf16>, vector<8x256xf32> -> vector<8x256xf32>
    %c0_15 = arith.constant 0 : index
    %c0_16 = arith.constant 0 : index
    %20 = vector.load %arg7[%c0_15, %c0_16] : memref<1x256xf32, #tpu.memory_space<vmem>>, vector<1x256xf32>
    %21 = vector.broadcast %20 : vector<1x256xf32> to vector<8x256xf32>
    %22 = arith.addf %19, %21 : vector<8x256xf32>
    %cst_17 = arith.constant 0.000000e+00 : f32
    %23 = vector.broadcast %cst_17 : f32 to vector<8x256xf32>
    %24 = arith.maximumf %22, %23 : vector<8x256xf32>
    %25 = arith.truncf %24 : vector<8x256xf32> to vector<8x256xbf16>
    %c0_18 = arith.constant 0 : index
    %c0_19 = arith.constant 0 : index
    %26 = vector.load %arg8[%c0_18, %c0_19] : memref<256x512xbf16, #tpu.memory_space<vmem>>, vector<256x512xbf16>
    %cst_20 = arith.constant dense<0.000000e+00> : vector<8x512xf32>
    %27 = tpu.matmul %25, %26, %cst_20 {dimension_numbers = #tpu.dot_dimension_numbers<[1], [0], [0], [1], [0, 0, 1, 1], [], []>} : vector<8x256xbf16>, vector<256x512xbf16>, vector<8x512xf32> -> vector<8x512xf32>
    %c0_21 = arith.constant 0 : index
    %c0_22 = arith.constant 0 : index
    %28 = vector.load %arg9[%c0_21, %c0_22] : memref<1x512xf32, #tpu.memory_space<vmem>>, vector<1x512xf32>
    %29 = vector.broadcast %28 : vector<1x512xf32> to vector<8x512xf32>
    %30 = arith.addf %27, %29 : vector<8x512xf32>
    %cst_23 = arith.constant 0.000000e+00 : f32
    %31 = vector.broadcast %cst_23 : f32 to vector<8x512xf32>
    %32 = arith.maximumf %30, %31 : vector<8x512xf32>
    %33 = arith.truncf %32 : vector<8x512xf32> to vector<8x512xbf16>
    %c0_24 = arith.constant 0 : index
    %c0_25 = arith.constant 0 : index
    %34 = vector.load %arg10[%c0_24, %c0_25] : memref<512x512xbf16, #tpu.memory_space<vmem>>, vector<512x512xbf16>
    %cst_26 = arith.constant dense<0.000000e+00> : vector<8x512xf32>
    %35 = tpu.matmul %33, %34, %cst_26 {dimension_numbers = #tpu.dot_dimension_numbers<[1], [0], [0], [1], [0, 0, 1, 1], [], []>} : vector<8x512xbf16>, vector<512x512xbf16>, vector<8x512xf32> -> vector<8x512xf32>
    %c0_27 = arith.constant 0 : index
    %c0_28 = arith.constant 0 : index
    %36 = vector.load %arg11[%c0_27, %c0_28] : memref<1x512xf32, #tpu.memory_space<vmem>>, vector<1x512xf32>
    %37 = vector.broadcast %36 : vector<1x512xf32> to vector<8x512xf32>
    %38 = arith.addf %35, %37 : vector<8x512xf32>
    %cst_29 = arith.constant 0.000000e+00 : f32
    %39 = vector.broadcast %cst_29 : f32 to vector<8x512xf32>
    %40 = arith.maximumf %38, %39 : vector<8x512xf32>
    %41 = arith.truncf %40 : vector<8x512xf32> to vector<8x512xbf16>
    %c0_30 = arith.constant 0 : index
    %c0_31 = arith.constant 0 : index
    %42 = vector.load %arg12[%c0_30, %c0_31] : memref<512x256xbf16, #tpu.memory_space<vmem>>, vector<512x256xbf16>
    %cst_32 = arith.constant dense<0.000000e+00> : vector<8x256xf32>
    %43 = tpu.matmul %41, %42, %cst_32 {dimension_numbers = #tpu.dot_dimension_numbers<[1], [0], [0], [1], [0, 0, 1, 1], [], []>} : vector<8x512xbf16>, vector<512x256xbf16>, vector<8x256xf32> -> vector<8x256xf32>
    %c0_33 = arith.constant 0 : index
    %c0_34 = arith.constant 0 : index
    %44 = vector.load %arg13[%c0_33, %c0_34] : memref<1x256xf32, #tpu.memory_space<vmem>>, vector<1x256xf32>
    %45 = vector.broadcast %44 : vector<1x256xf32> to vector<8x256xf32>
    %46 = arith.addf %43, %45 : vector<8x256xf32>
    %cst_35 = arith.constant 0.000000e+00 : f32
    %47 = vector.broadcast %cst_35 : f32 to vector<8x256xf32>
    %48 = arith.maximumf %46, %47 : vector<8x256xf32>
    %c0_36 = arith.constant 0 : index
    %c0_37 = arith.constant 0 : index
    %49 = vector.load %arg14[%c0_36, %c0_37] : memref<1x256xf32, #tpu.memory_space<vmem>>, vector<1x256xf32>
    %50 = vector.broadcast %49 : vector<1x256xf32> to vector<8x256xf32>
    %51 = arith.mulf %48, %50 : vector<8x256xf32>
    %cst_38 = arith.constant dense<0.000000e+00> : vector<8xf32>
    %52 = vector.multi_reduction <add>, %51, %cst_38 [1] : vector<8x256xf32> to vector<8xf32>
    %53 = vector.shape_cast %52 : vector<8xf32> to vector<8x1xf32>
    %c0_39 = arith.constant 0 : index
    %c0_40 = arith.constant 0 : index
    %54 = vector.load %arg15[%c0_39, %c0_40] : memref<1x1xf32, #tpu.memory_space<vmem>>, vector<1x1xf32>
    %55 = vector.broadcast %54 : vector<1x1xf32> to vector<8x1xf32>
    %56 = arith.addf %53, %55 : vector<8x1xf32>
    %c0_41 = arith.constant 0 : index
    %c0_42 = arith.constant 0 : index
    %57 = vector.load %arg16[%c0_41, %c0_42] : memref<8x1xf32, #tpu.memory_space<vmem>>, vector<8x1xf32>
    tpu.vector_store %arg16[%c0_41, %c0_42], %56 {strides = array<i32>} : memref<8x1xf32, #tpu.memory_space<vmem>>, vector<8x1xf32>,
    return
  }
  func.func @transform_0(%arg0: i32) -> (i32, i32) {
    %c0_i32 = arith.constant 0 : i32
    %c0_i32_0 = arith.constant 0 : i32
    return %arg0, %c0_i32 : i32, i32
  }
  func.func @transform_1(%arg0: i32) -> (i32, i32) {
    %c0_i32 = arith.constant 0 : i32
    %c0_i32_0 = arith.constant 0 : i32
    %c0_i32_1 = arith.constant 0 : i32
    return %c0_i32, %c0_i32_0 : i32, i32
  }
  func.func @transform_2(%arg0: i32) -> (i32, i32) {
    %c0_i32 = arith.constant 0 : i32
    %c0_i32_0 = arith.constant 0 : i32
    %c0_i32_1 = arith.constant 0 : i32
    return %c0_i32, %c0_i32_0 : i32, i32
  }
  func.func @transform_3(%arg0: i32) -> (i32, i32) {
    %c0_i32 = arith.constant 0 : i32
    %c0_i32_0 = arith.constant 0 : i32
    %c0_i32_1 = arith.constant 0 : i32
    return %c0_i32, %c0_i32_0 : i32, i32
  }
  func.func @transform_4(%arg0: i32) -> (i32, i32) {
    %c0_i32 = arith.constant 0 : i32
    %c0_i32_0 = arith.constant 0 : i32
    %c0_i32_1 = arith.constant 0 : i32
    return %c0_i32, %c0_i32_0 : i32, i32
  }
  func.func @transform_5(%arg0: i32) -> (i32, i32) {
    %c0_i32 = arith.constant 0 : i32
    %c0_i32_0 = arith.constant 0 : i32
    %c0_i32_1 = arith.constant 0 : i32
    return %c0_i32, %c0_i32_0 : i32, i32
  }
  func.func @transform_6(%arg0: i32) -> (i32, i32) {
    %c0_i32 = arith.constant 0 : i32
    %c0_i32_0 = arith.constant 0 : i32
    %c0_i32_1 = arith.constant 0 : i32
    return %c0_i32, %c0_i32_0 : i32, i32
  }
  func.func @transform_7(%arg0: i32) -> (i32, i32) {
    %c0_i32 = arith.constant 0 : i32
    %c0_i32_0 = arith.constant 0 : i32
    %c0_i32_1 = arith.constant 0 : i32
    return %c0_i32, %c0_i32_0 : i32, i32
  }
  func.func @transform_8(%arg0: i32) -> (i32, i32) {
    %c0_i32 = arith.constant 0 : i32
    %c0_i32_0 = arith.constant 0 : i32
    %c0_i32_1 = arith.constant 0 : i32
    return %c0_i32, %c0_i32_0 : i32, i32
  }
  func.func @transform_9(%arg0: i32) -> (i32, i32) {
    %c0_i32 = arith.constant 0 : i32
    %c0_i32_0 = arith.constant 0 : i32
    %c0_i32_1 = arith.constant 0 : i32
    return %c0_i32, %c0_i32_0 : i32, i32
  }
  func.func @transform_10(%arg0: i32) -> (i32, i32) {
    %c0_i32 = arith.constant 0 : i32
    %c0_i32_0 = arith.constant 0 : i32
    %c0_i32_1 = arith.constant 0 : i32
    return %c0_i32, %c0_i32_0 : i32, i32
  }
  func.func @transform_11(%arg0: i32) -> (i32, i32) {
    %c0_i32 = arith.constant 0 : i32
    %c0_i32_0 = arith.constant 0 : i32
    %c0_i32_1 = arith.constant 0 : i32
    return %c0_i32, %c0_i32_0 : i32, i32
  }
  func.func @transform_12(%arg0: i32) -> (i32, i32) {
    %c0_i32 = arith.constant 0 : i32
    %c0_i32_0 = arith.constant 0 : i32
    %c0_i32_1 = arith.constant 0 : i32
    return %c0_i32, %c0_i32_0 : i32, i32
  }
  func.func @transform_13(%arg0: i32) -> (i32, i32) {
    %c0_i32 = arith.constant 0 : i32
    %c0_i32_0 = arith.constant 0 : i32
    %c0_i32_1 = arith.constant 0 : i32
    return %c0_i32, %c0_i32_0 : i32, i32
  }
  func.func @transform_14(%arg0: i32) -> (i32, i32) {
    %c0_i32 = arith.constant 0 : i32
    %c0_i32_0 = arith.constant 0 : i32
    %c0_i32_1 = arith.constant 0 : i32
    return %c0_i32, %c0_i32_0 : i32, i32
  }
  func.func @transform_15(%arg0: i32) -> (i32, i32) {
    %c0_i32 = arith.constant 0 : i32
    %c0_i32_0 = arith.constant 0 : i32
    return %arg0, %c0_i32 : i32, i32
  }
}

</mosaic_0001>

<llo_original>
// kernel: tpu_custom_call.1
$region0: #{tpu_custom_call.1}
  #allocation0 [shape = 'u32[]', space=smem, size = 0x4, offset = 0x4, fixed_abs, tag = 'smem constant byte address 0x4 - core index']
  #allocation1 [shape = 'u32[144,128]{1,0:T(1,128)}', space=vmem, size = 0x12000, scoped, tag = 'internal scratch']
  #allocation2 [shape = 'f32[1,1]{1,0:T(1,128)S(1)}', space=vmem, size = 0x200, scoped, tag = 'scoped memory for tpu_custom_call.1']
  %s0 = inlined_call_operand.hbm [shape: f32[8,40], index: 0, kind: input, shape index: {}]
  %s1 = inlined_call_operand.hbm [shape: bf16[40,64], index: 1, kind: input, shape index: {}]
  %s2 = inlined_call_operand.hbm [shape: f32[1,64], index: 2, kind: input, shape index: {}]
  %s3 = inlined_call_operand.hbm [shape: bf16[64,128], index: 3, kind: input, shape index: {}]
  %s4 = inlined_call_operand.hbm [shape: f32[1,128], index: 4, kind: input, shape index: {}]
  %s5 = inlined_call_operand.hbm [shape: bf16[128,256], index: 5, kind: input, shape index: {}]
  %s6 = inlined_call_operand.vmem [shape: f32[1,256], index: 6, kind: input, shape index: {}]
  %s7 = inlined_call_operand.hbm [shape: bf16[256,512], index: 7, kind: input, shape index: {}]
  %s8 = inlined_call_operand.vmem [shape: f32[1,512], index: 8, kind: input, shape index: {}]
  %s9 = inlined_call_operand.hbm [shape: bf16[512,512], index: 9, kind: input, shape index: {}]
  %s10 = inlined_call_operand.vmem [shape: f32[1,512], index: 10, kind: input, shape index: {}]
  %s11 = inlined_call_operand.hbm [shape: bf16[512,256], index: 11, kind: input, shape index: {}]
  %s12 = inlined_call_operand.vmem [shape: f32[1,256], index: 12, kind: input, shape index: {}]
  %s13 = inlined_call_operand.vmem [shape: f32[1,256], index: 13, kind: input, shape index: {}]
  %s14 = inlined_call_operand.<no memory space> [shape: f32[1,1], index: 14, kind: input, shape index: {}]
  %s15 = inlined_call_operand.vmem [shape: f32[8,1], index: 15, kind: output, shape index: {}]
  %s16 = sld [smem:[#allocation0]]
  $region106: #{tpu_custom_call.1} parent=0
    _
  %s18 = ssub.s32 1, %s16
  %s19 = scalar_select 0, %s18, %s16
  %v20 = vstv %s14
  %21 = vst [vmem:[#allocation2] sm:$0x1] %v20
  $region1: #{tpu_custom_call.1} parent=0
    #allocation3 [shape = 'u8[4096]{0}', space=vmem, size = 0x1000, scoped, tag = 'input window, operand 0, single buffered']
    #allocation4 [shape = 's32[1]{0}', space=sflag, size = 0x4, scoped, tag = 'scoped memory for tpu_custom_call.1']
    #allocation5 [shape = 'u8[10240]{0}', space=vmem, size = 0x2800, scoped, tag = 'input window, operand 1, single buffered']
    #allocation6 [shape = 's32[1]{0}', space=sflag, size = 0x4, scoped, tag = 'scoped memory for tpu_custom_call.1']
    #allocation7 [shape = 'u8[512]{0}', space=vmem, size = 0x400, scoped, tag = 'input window, operand 2, single buffered']
    #allocation8 [shape = 'u8[16384]{0}', space=vmem, size = 0x4000, scoped, tag = 'input window, operand 3, single buffered']
    #allocation9 [shape = 's32[1]{0}', space=sflag, size = 0x4, scoped, tag = 'scoped memory for tpu_custom_call.1']
    #allocation10 [shape = 'u8[512]{0}', space=vmem, size = 0x400, scoped, tag = 'input window, operand 4, single buffered']
    #allocation11 [shape = 'u8[65536]{0}', space=vmem, size = 0x10000, scoped, tag = 'input window, operand 5, single buffered']
    #allocation12 [shape = 's32[1]{0}', space=sflag, size = 0x4, scoped, tag = 'scoped memory for tpu_custom_call.1']
    #allocation13 [shape = 'u8[262144]{0}', space=vmem, size = 0x40000, scoped, tag = 'input window, operand 7, single buffered']
    #allocation14 [shape = 'u8[524288]{0}', space=vmem, size = 0x80000, scoped, tag = 'input window, operand 9, single buffered']
    #allocation15 [shape = 's32[1]{0}', space=sflag, size = 0x4, scoped, tag = 'scoped memory for tpu_custom_call.1']
    #allocation16 [shape = 'u8[262144]{0}', space=vmem, size = 0x40000, scoped, tag = 'input window, operand 11, single buffered']
    %22 = vsyncpa [#allocation4], 0
    %23 = vsyncpa [#allocation6], 0
    %24 = vsyncpa [#allocation9], 0
    %25 = vsyncpa [#allocation12], 0
    %26 = vsyncpa [#allocation15], 0
    // Predicated region
    $region2: #{tpu_custom_call.1} parent=1 // pred_check
      _
    $region3: #{tpu_custom_call.1} parent=1 // pred_check_branch
      %28 = sbr.rel (0) target = $region5
    $region4: #{tpu_custom_call.1} parent=1 // pred_region
      %s30 = ssub.s32 128, 128
      %31 = vsyncadd [#allocation4], %s30
      %s33 = sshll.u32 [#allocation3], 4
      %s34 = int_to_ptr.vmem [resolvable:$true] %s33
      %36 = dma.hbm_to_vmem [thread:$0]  %s0, 128, %s34, [#allocation4]
    $region5: #{tpu_custom_call.1} parent=1 // pred_fallthru
      _
    // Predicated region
    $region6: #{tpu_custom_call.1} parent=1 // pred_check
      _
    $region7: #{tpu_custom_call.1} parent=1 // pred_check_branch
      %38 = sbr.rel (0) target = $region9
    $region8: #{tpu_custom_call.1} parent=1 // pred_region
      %s40 = ssub.s32 320, 320
      %41 = vsyncadd [#allocation6], %s40
      %s42 = sshll.u32 [#allocation5], 4
      %s43 = int_to_ptr.vmem [resolvable:$true] %s42
      %48 = dma.hbm_to_vmem [thread:$0]  %s1, 320, %s43, [#allocation6], 64, 64, 4
    $region9: #{tpu_custom_call.1} parent=1 // pred_fallthru
      _
    // Predicated region
    $region10: #{tpu_custom_call.1} parent=1 // pred_check
      _
    $region11: #{tpu_custom_call.1} parent=1 // pred_check_branch
      %50 = sbr.rel (0) target = $region13
    $region12: #{tpu_custom_call.1} parent=1 // pred_region
      %s52 = ssub.s32 16, 16
      %53 = vsyncadd [#allocation6], %s52
      %s55 = sshll.u32 [#allocation7], 4
      %s56 = int_to_ptr.vmem [resolvable:$true] %s55
      %58 = dma.hbm_to_vmem [thread:$0]  %s2, 16, %s56, [#allocation6]
    $region13: #{tpu_custom_call.1} parent=1 // pred_fallthru
      _
    // Predicated region
    $region14: #{tpu_custom_call.1} parent=1 // pred_check
      _
    $region15: #{tpu_custom_call.1} parent=1 // pred_check_branch
      %60 = sbr.rel (0) target = $region17
    $region16: #{tpu_custom_call.1} parent=1 // pred_region
      %s62 = ssub.s32 512, 512
      %63 = vsyncadd [#allocation9], %s62
      %s64 = sshll.u32 [#allocation8], 4
      %s65 = int_to_ptr.vmem [resolvable:$true] %s64
      %70 = dma.hbm_to_vmem [thread:$0]  %s3, 512, %s65, [#allocation9], 64, 64, 4
    $region17: #{tpu_custom_call.1} parent=1 // pred_fallthru
      _
    // Predicated region
    $region18: #{tpu_custom_call.1} parent=1 // pred_check
      _
    $region19: #{tpu_custom_call.1} parent=1 // pred_check_branch
      %72 = sbr.rel (0) target = $region21
    $region20: #{tpu_custom_call.1} parent=1 // pred_region
      %s74 = ssub.s32 16, 16
      %75 = vsyncadd [#allocation9], %s74
      %s77 = sshll.u32 [#allocation10], 4
      %s78 = int_to_ptr.vmem [resolvable:$true] %s77
      %80 = dma.hbm_to_vmem [thread:$0]  %s4, 16, %s78, [#allocation9]
    $region21: #{tpu_custom_call.1} parent=1 // pred_fallthru
      _
    // Predicated region
    $region22: #{tpu_custom_call.1} parent=1 // pred_check
      _
    $region23: #{tpu_custom_call.1} parent=1 // pred_check_branch
      %82 = sbr.rel (0) target = $region25
    $region24: #{tpu_custom_call.1} parent=1 // pred_region
      %s84 = ssub.s32 2048, 2048
      %85 = vsyncadd [#allocation12], %s84
      %s86 = sshll.u32 [#allocation11], 4
      %s87 = int_to_ptr.vmem [resolvable:$true] %s86
      %92 = dma.hbm_to_vmem [thread:$0]  %s5, 2048, %s87, [#allocation12], 128, 128, 8
    $region25: #{tpu_custom_call.1} parent=1 // pred_fallthru
      _
    // Predicated region
    $region26: #{tpu_custom_call.1} parent=1 // pred_check
      _
    $region27: #{tpu_custom_call.1} parent=1 // pred_check_branch
      %94 = sbr.rel (0) target = $region29
    $region28: #{tpu_custom_call.1} parent=1 // pred_region
      _
    $region29: #{tpu_custom_call.1} parent=1 // pred_fallthru
      _
    // Predicated region
    $region30: #{tpu_custom_call.1} parent=1 // pred_check
      _
    $region31: #{tpu_custom_call.1} parent=1 // pred_check_branch
      %96 = sbr.rel (0) target = $region33
    $region32: #{tpu_custom_call.1} parent=1 // pred_region
      %s98 = ssub.s32 8192, 8192
      %99 = vsyncadd [#allocation12], %s98
      %s100 = sshll.u32 [#allocation13], 4
      %s101 = int_to_ptr.vmem [resolvable:$true] %s100
      %106 = dma.hbm_to_vmem [thread:$0]  %s7, 8192, %s101, [#allocation12], 256, 256, 16
    $region33: #{tpu_custom_call.1} parent=1 // pred_fallthru
      _
    // Predicated region
    $region34: #{tpu_custom_call.1} parent=1 // pred_check
      _
    $region35: #{tpu_custom_call.1} parent=1 // pred_check_branch
      %108 = sbr.rel (0) target = $region37
    $region36: #{tpu_custom_call.1} parent=1 // pred_region
      _
    $region37: #{tpu_custom_call.1} parent=1 // pred_fallthru
      _
    // Predicated region
    $region38: #{tpu_custom_call.1} parent=1 // pred_check
      _
    $region39: #{tpu_custom_call.1} parent=1 // pred_check_branch
      %110 = sbr.rel (0) target = $region41
    $region40: #{tpu_custom_call.1} parent=1 // pred_region
      %s112 = ssub.s32 16384, 16384
      %113 = vsyncadd [#allocation15], %s112
      %s114 = sshll.u32 [#allocation14], 4
      %s115 = int_to_ptr.vmem [resolvable:$true] %s114
      %120 = dma.hbm_to_vmem [thread:$0]  %s9, 16384, %s115, [#allocation15], 256, 256, 16
    $region41: #{tpu_custom_call.1} parent=1 // pred_fallthru
      _
    // Predicated region
    $region42: #{tpu_custom_call.1} parent=1 // pred_check
      _
    $region43: #{tpu_custom_call.1} parent=1 // pred_check_branch
      %122 = sbr.rel (0) target = $region45
    $region44: #{tpu_custom_call.1} parent=1 // pred_region
      _
    $region45: #{tpu_custom_call.1} parent=1 // pred_fallthru
      _
    // Predicated region
    $region46: #{tpu_custom_call.1} parent=1 // pred_check
      _
    $region47: #{tpu_custom_call.1} parent=1 // pred_check_branch
      %124 = sbr.rel (0) target = $region49
    $region48: #{tpu_custom_call.1} parent=1 // pred_region
      %s126 = ssub.s32 8192, 8192
      %127 = vsyncadd [#allocation15], %s126
      %s128 = sshll.u32 [#allocation16], 4
      %s129 = int_to_ptr.vmem [resolvable:$true] %s128
      %134 = dma.hbm_to_vmem [thread:$0]  %s11, 8192, %s129, [#allocation15], 128, 128, 8
    $region49: #{tpu_custom_call.1} parent=1 // pred_fallthru
      _
    // Predicated region
    $region50: #{tpu_custom_call.1} parent=1 // pred_check
      _
    $region51: #{tpu_custom_call.1} parent=1 // pred_check_branch
      %136 = sbr.rel (0) target = $region53
    $region52: #{tpu_custom_call.1} parent=1 // pred_region
      _
    $region53: #{tpu_custom_call.1} parent=1 // pred_fallthru
      _
    // Predicated region
    $region54: #{tpu_custom_call.1} parent=1 // pred_check
      _
    $region55: #{tpu_custom_call.1} parent=1 // pred_check_branch
      %138 = sbr.rel (0) target = $region57
    $region56: #{tpu_custom_call.1} parent=1 // pred_region
      _
    $region57: #{tpu_custom_call.1} parent=1 // pred_fallthru
      _
    // Predicated region
    $region58: #{tpu_custom_call.1} parent=1 // pred_check
      _
    $region59: #{tpu_custom_call.1} parent=1 // pred_check_branch
      %140 = sbr.rel (0) target = $region61
    $region60: #{tpu_custom_call.1} parent=1 // pred_region
      _
    $region61: #{tpu_custom_call.1} parent=1 // pred_fallthru
      _
    // Predicated region
    $region62: #{tpu_custom_call.1} parent=1 // pred_check
      _
    $region63: #{tpu_custom_call.1} parent=1 // pred_check_branch
      %142 = sbr.rel (0) target = $region65
    $region64: #{tpu_custom_call.1} parent=1 // pred_region
      %143 = dma.done [#allocation4], 128
    $region65: #{tpu_custom_call.1} parent=1 // pred_fallthru
      _
    // Predicated region
    $region66: #{tpu_custom_call.1} parent=1 // pred_check
      _
    $region67: #{tpu_custom_call.1} parent=1 // pred_check_branch
      %145 = sbr.rel (0) target = $region69
    $region68: #{tpu_custom_call.1} parent=1 // pred_region
      %146 = dma.done [#allocation6], 320
    $region69: #{tpu_custom_call.1} parent=1 // pred_fallthru
      _
    // Predicated region
    $region70: #{tpu_custom_call.1} parent=1 // pred_check
      _
    $region71: #{tpu_custom_call.1} parent=1 // pred_check_branch
      %148 = sbr.rel (0) target = $region73
    $region72: #{tpu_custom_call.1} parent=1 // pred_region
      %149 = dma.done [#allocation6], 16
    $region73: #{tpu_custom_call.1} parent=1 // pred_fallthru
      _
    // Predicated region
    $region74: #{tpu_custom_call.1} parent=1 // pred_check
      _
    $region75: #{tpu_custom_call.1} parent=1 // pred_check_branch
      %151 = sbr.rel (0) target = $region77
    $region76: #{tpu_custom_call.1} parent=1 // pred_region
      %152 = dma.done [#allocation9], 512
    $region77: #{tpu_custom_call.1} parent=1 // pred_fallthru
      _
    // Predicated region
    $region78: #{tpu_custom_call.1} parent=1 // pred_check
      _
    $region79: #{tpu_custom_call.1} parent=1 // pred_check_branch
      %154 = sbr.rel (0) target = $region81
    $region80: #{tpu_custom_call.1} parent=1 // pred_region
      %155 = dma.done [#allocation9], 16
    $region81: #{tpu_custom_call.1} parent=1 // pred_fallthru
      _
    // Predicated region
    $region82: #{tpu_custom_call.1} parent=1 // pred_check
      _
    $region83: #{tpu_custom_call.1} parent=1 // pred_check_branch
      %157 = sbr.rel (0) target = $region85
    $region84: #{tpu_custom_call.1} parent=1 // pred_region
      %158 = dma.done [#allocation12], 2048
    $region85: #{tpu_custom_call.1} parent=1 // pred_fallthru
      _
    // Predicated region
    $region86: #{tpu_custom_call.1} parent=1 // pred_check
      _
    $region87: #{tpu_custom_call.1} parent=1 // pred_check_branch
      %160 = sbr.rel (0) target = $region89
    $region88: #{tpu_custom_call.1} parent=1 // pred_region
      %161 = dma.done [#allocation12], 8192
    $region89: #{tpu_custom_call.1} parent=1 // pred_fallthru
      _
    // Predicated region
    $region90: #{tpu_custom_call.1} parent=1 // pred_check
      _
    $region91: #{tpu_custom_call.1} parent=1 // pred_check_branch
      %163 = sbr.rel (0) target = $region93
    $region92: #{tpu_custom_call.1} parent=1 // pred_region
      %164 = dma.done [#allocation15], 16384
    $region93: #{tpu_custom_call.1} parent=1 // pred_fallthru
      _
    // Predicated region
    $region94: #{tpu_custom_call.1} parent=1 // pred_check
      _
    $region95: #{tpu_custom_call.1} parent=1 // pred_check_branch
      %166 = sbr.rel (0) target = $region97
    $region96: #{tpu_custom_call.1} parent=1 // pred_region
      %167 = dma.done [#allocation15], 8192
    $region97: #{tpu_custom_call.1} parent=1 // pred_fallthru
      _
    %v169 = vld [vmem:[#allocation3] sm:$0xff]
    %v170 = vpack.c.bf16 %v169, %v169
    %v171 = vld [vmem:[#allocation5] sm:$0xf]
    %v172 = vld [vmem:[#allocation5 + $0x4] sm:$0xf]
    %v173 = vld [vmem:[#allocation5 + $0x8] sm:$0xf]
    %v174 = vld [vmem:[#allocation5 + $0xc] sm:$0xf]
    %v175 = vld [vmem:[#allocation5 + $0x10] sm:$0xf]
    %v176 = vld [vmem:[#allocation7] sm:$0x1]
    %v178 = vlaneseq
    %v179 = vshrl.u32 %v178, 7
    %v180 = vsub.s32 0, %v179
    %v181 = vrot.slane %v176, %v180
    %v188 = vunpack.c.l.b16 %v171
    %v189 = vunpack.c.l.b16 %v172
    %v190 = vunpack.c.l.b16 %v173
    %v191 = vunpack.c.l.b16 %v174
    %v192 = vunpack.c.l.b16 %v175
    %v193 = vpack.c.b16 %v189, %v188
    %v194 = vpack.c.b16 %v191, %v190
    %v195 = vpack.c.b16 %v192, %v192
    %vm198 = vcmask 326656
    %v200 = vsel %vm198, %v170, 0
    %vm202 = vcmask 1043456
    %v204 = vsel %vm202, %v195, 0
    %206 = vmatprep.subr.bf16.mxu0 0
    %207 = vmatpush1.bf16.msra.mxu0 0
    %208 = vmatprep.subr.bf16.mxu0 0
    %209 = vmatpush1.bf16.msra.mxu0 0
    %210 = vmatprep.subr.bf16.mxu0 0
    %211 = vmatpush1.bf16.msra.mxu0 0
    %212 = vmatprep.subr.bf16.mxu0 0
    %213 = vmatpush1.bf16.msra.mxu0 0
    %214 = vmatprep.subr.bf16.mxu0 0
    %215 = vmatpush1.bf16.msra.mxu0 0
    %216 = vmatprep.subr.bf16.mxu0 0
    %217 = vmatpush1.bf16.msra.mxu0 %v204
    %218 = vmatprep.subr.bf16.mxu0 0
    %219 = vmatpush1.bf16.msra.mxu0 %v194
    %220 = vmatprep.subr.bf16.mxu0 0
    %221 = vmatpush1.bf16.msra.mxu0 %v193
    %222 = vmatprep.subr.bf16.mxu0 0
    %223 = vmatpush2.bf16.msra.mxu0 0
    %224 = vmatprep.subr.bf16.mxu0 0
    %225 = vmatpush2.bf16.msra.mxu0 0
    %226 = vmatprep.subr.bf16.mxu0 0
    %227 = vmatpush2.bf16.msra.mxu0 0
    %228 = vmatprep.subr.bf16.mxu0 0
    %229 = vmatpush2.bf16.msra.mxu0 0
    %230 = vmatprep.subr.bf16.mxu0 0
    %231 = vmatpush2.bf16.msra.mxu0 0
    %232 = vmatprep.subr.bf16.mxu0 0
    %233 = vmatpush2.bf16.msra.mxu0 0
    %234 = vmatprep.subr.bf16.mxu0 0
    %235 = vmatpush2.bf16.msra.mxu0 0
    %236 = vmatprep.subr.bf16.mxu0 0
    %237 = vmatpush2.bf16.msra.mxu0 0
    %238 = vmatprep.mubr.bf16.mxu0 0
    %239 = vmatmul.mubr.bf16.gmra.mxu0 %v200
    %v240 = vpop.f32.mrf.mxu0
    %v241 = vadd.f32 %v181, %v240
    %v242 = vpop.f32.mrf.mxu0
    %v243 = vpop.f32.mrf.mxu0
    %v244 = vpop.f32.mrf.mxu0
    %245 = vdwg.mxu0
    %v246 = vmax.f32 %v241, 0.0
    %v247 = vpack.c.bf16 %v246, %v246
    %v248 = vld [vmem:[#allocation8] sm:$0xf]
    %v249 = vld [vmem:[#allocation8 + $0x4] sm:$0xf]
    %v250 = vld [vmem:[#allocation8 + $0x8] sm:$0xf]
    %v251 = vld [vmem:[#allocation8 + $0xc] sm:$0xf]
    %v252 = vld [vmem:[#allocation8 + $0x10] sm:$0xf]
    %v253 = vld [vmem:[#allocation8 + $0x14] sm:$0xf]
    %v254 = vld [vmem:[#allocation8 + $0x18] sm:$0xf]
    %v255 = vld [vmem:[#allocation8 + $0x1c] sm:$0xf]
    %v256 = vld [vmem:[#allocation10] sm:$0x1]
    %v258 = vlaneseq
    %v259 = vshrl.u32 %v258, 7
    %v260 = vsub.s32 0, %v259
    %v261 = vrot.slane %v256, %v260
    %v271 = vunpack.c.l.b16 %v248
    %v272 = vunpack.c.l.b16 %v249
    %v273 = vunpack.c.l.b16 %v250
    %v274 = vunpack.c.l.b16 %v251
    %v275 = vunpack.c.l.b16 %v252
    %v276 = vunpack.c.l.b16 %v253
    %v277 = vunpack.c.l.b16 %v254
    %v278 = vunpack.c.l.b16 %v255
    %v279 = vpack.c.b16 %v272, %v271
    %v280 = vpack.c.b16 %v274, %v273
    %v281 = vpack.c.b16 %v276, %v275
    %v282 = vpack.c.b16 %v278, %v277
    %vm287 = vcmask 523264
    %v289 = vsel %vm287, %v247, 0
    %291 = vmatprep.subr.bf16.mxu0 0
    %292 = vmatpush1.bf16.msra.mxu0 0
    %293 = vmatprep.subr.bf16.mxu0 0
    %294 = vmatpush1.bf16.msra.mxu0 0
    %295 = vmatprep.subr.bf16.mxu0 0
    %296 = vmatpush1.bf16.msra.mxu0 0
    %297 = vmatprep.subr.bf16.mxu0 0
    %298 = vmatpush1.bf16.msra.mxu0 0
    %299 = vmatprep.subr.bf16.mxu0 0
    %300 = vmatpush1.bf16.msra.mxu0 %v282
    %301 = vmatprep.subr.bf16.mxu0 0
    %302 = vmatpush1.bf16.msra.mxu0 %v281
    %303 = vmatprep.subr.bf16.mxu0 0
    %304 = vmatpush1.bf16.msra.mxu0 %v280
    %305 = vmatprep.subr.bf16.mxu0 0
    %306 = vmatpush1.bf16.msra.mxu0 %v279
    %307 = vmatprep.subr.bf16.mxu0 0
    %308 = vmatpush2.bf16.msra.mxu0 0
    %309 = vmatprep.subr.bf16.mxu0 0
    %310 = vmatpush2.bf16.msra.mxu0 0
    %311 = vmatprep.subr.bf16.mxu0 0
    %312 = vmatpush2.bf16.msra.mxu0 0
    %313 = vmatprep.subr.bf16.mxu0 0
    %314 = vmatpush2.bf16.msra.mxu0 0
    %315 = vmatprep.subr.bf16.mxu0 0
    %316 = vmatpush2.bf16.msra.mxu0 0
    %317 = vmatprep.subr.bf16.mxu0 0
    %318 = vmatpush2.bf16.msra.mxu0 0
    %319 = vmatprep.subr.bf16.mxu0 0
    %320 = vmatpush2.bf16.msra.mxu0 0
    %321 = vmatprep.subr.bf16.mxu0 0
    %322 = vmatpush2.bf16.msra.mxu0 0
    %323 = vmatprep.mubr.bf16.mxu0 0
    %324 = vmatmul.mubr.bf16.gmra.mxu0 %v289
    %v325 = vpop.f32.mrf.mxu0
    %v326 = vadd.f32 %v261, %v325
    %v327 = vpop.f32.mrf.mxu0
    %v328 = vpop.f32.mrf.mxu0
    %v329 = vpop.f32.mrf.mxu0
    %330 = vdwg.mxu0
    %v331 = vmax.f32 %v326, 0.0
    %v332 = vpack.c.bf16 %v331, %v331
    %v333 = vld [vmem:[#allocation11] sm:$0xff]
    %v334 = vld [vmem:[#allocation11 + $0x8] sm:$0xff]
    %v335 = vld [vmem:[#allocation11 + $0x10] sm:$0xff]
    %v336 = vld [vmem:[#allocation11 + $0x18] sm:$0xff]
    %v337 = vld [vmem:[#allocation11 + $0x20] sm:$0xff]
    %v338 = vld [vmem:[#allocation11 + $0x28] sm:$0xff]
    %v339 = vld [vmem:[#allocation11 + $0x30] sm:$0xff]
    %v340 = vld [vmem:[#allocation11 + $0x38] sm:$0xff]
    %v341 = vld [vmem:[#allocation11 + $0x40] sm:$0xff]
    %v342 = vld [vmem:[#allocation11 + $0x48] sm:$0xff]
    %v343 = vld [vmem:[#allocation11 + $0x50] sm:$0xff]
    %v344 = vld [vmem:[#allocation11 + $0x58] sm:$0xff]
    %v345 = vld [vmem:[#allocation11 + $0x60] sm:$0xff]
    %v346 = vld [vmem:[#allocation11 + $0x68] sm:$0xff]
    %v347 = vld [vmem:[#allocation11 + $0x70] sm:$0xff]
    %v348 = vld [vmem:[#allocation11 + $0x78] sm:$0xff]
    %v349 = vld [vmem:[%s6] sm:$0x3]
    %v351 = vlaneseq
    %v352 = vshrl.u32 %v351, 7
    %v353 = vsub.s32 0, %v352
    %v354 = vrot.slane %v349, %v353
    %v355 = vlaneseq
    %v356 = vshrl.u32 %v355, 7
    %v357 = vsub.s32 1, %v356
    %v358 = vrot.slane %v349, %v357
    %v377 = vunpack.c.l.b16 %v333
    %v378 = vunpack.c.h.b16 %v333
    %v379 = vunpack.c.l.b16 %v334
    %v380 = vunpack.c.h.b16 %v334
    %v381 = vunpack.c.l.b16 %v335
    %v382 = vunpack.c.h.b16 %v335
    %v383 = vunpack.c.l.b16 %v336
    %v384 = vunpack.c.h.b16 %v336
    %v385 = vunpack.c.l.b16 %v337
    %v386 = vunpack.c.h.b16 %v337
    %v387 = vunpack.c.l.b16 %v338
    %v388 = vunpack.c.h.b16 %v338
    %v389 = vunpack.c.l.b16 %v339
    %v390 = vunpack.c.h.b16 %v339
    %v391 = vunpack.c.l.b16 %v340
    %v392 = vunpack.c.h.b16 %v340
    %v393 = vunpack.c.l.b16 %v341
    %v394 = vunpack.c.h.b16 %v341
    %v395 = vunpack.c.l.b16 %v342
    %v396 = vunpack.c.h.b16 %v342
    %v397 = vunpack.c.l.b16 %v343
    %v398 = vunpack.c.h.b16 %v343
    %v399 = vunpack.c.l.b16 %v344
    %v400 = vunpack.c.h.b16 %v344
    %v401 = vunpack.c.l.b16 %v345
    %v402 = vunpack.c.h.b16 %v345
    %v403 = vunpack.c.l.b16 %v346
    %v404 = vunpack.c.h.b16 %v346
    %v405 = vunpack.c.l.b16 %v347
    %v406 = vunpack.c.h.b16 %v347
    %v407 = vunpack.c.l.b16 %v348
    %v408 = vunpack.c.h.b16 %v348
    %v409 = vpack.c.b16 %v379, %v377
    %v410 = vpack.c.b16 %v380, %v378
    %v411 = vpack.c.b16 %v383, %v381
    %v412 = vpack.c.b16 %v384, %v382
    %v413 = vpack.c.b16 %v387, %v385
    %v414 = vpack.c.b16 %v388, %v386
    %v415 = vpack.c.b16 %v391, %v389
    %v416 = vpack.c.b16 %v392, %v390
    %v417 = vpack.c.b16 %v395, %v393
    %v418 = vpack.c.b16 %v396, %v394
    %v419 = vpack.c.b16 %v399, %v397
    %v420 = vpack.c.b16 %v400, %v398
    %v421 = vpack.c.b16 %v403, %v401
    %v422 = vpack.c.b16 %v404, %v402
    %v423 = vpack.c.b16 %v407, %v405
    %v424 = vpack.c.b16 %v408, %v406
    %441 = vmatprep.subr.bf16.mxu0 %v424
    %442 = vmatpush1.bf16.msra.mxu0 %v423
    %443 = vmatprep.subr.bf16.mxu0 %v422
    %444 = vmatpush1.bf16.msra.mxu0 %v421
    %445 = vmatprep.subr.bf16.mxu0 %v420
    %446 = vmatpush1.bf16.msra.mxu0 %v419
    %447 = vmatprep.subr.bf16.mxu0 %v418
    %448 = vmatpush1.bf16.msra.mxu0 %v417
    %449 = vmatprep.subr.bf16.mxu0 %v416
    %450 = vmatpush1.bf16.msra.mxu0 %v415
    %451 = vmatprep.subr.bf16.mxu0 %v414
    %452 = vmatpush1.bf16.msra.mxu0 %v413
    %453 = vmatprep.subr.bf16.mxu0 %v412
    %454 = vmatpush1.bf16.msra.mxu0 %v411
    %455 = vmatprep.subr.bf16.mxu0 %v410
    %456 = vmatpush1.bf16.msra.mxu0 %v409
    %457 = vmatprep.subr.bf16.mxu0 0
    %458 = vmatpush2.bf16.msra.mxu0 0
    %459 = vmatprep.subr.bf16.mxu0 0
    %460 = vmatpush2.bf16.msra.mxu0 0
    %461 = vmatprep.subr.bf16.mxu0 0
    %462 = vmatpush2.bf16.msra.mxu0 0
    %463 = vmatprep.subr.bf16.mxu0 0
    %464 = vmatpush2.bf16.msra.mxu0 0
    %465 = vmatprep.subr.bf16.mxu0 0
    %466 = vmatpush2.bf16.msra.mxu0 0
    %467 = vmatprep.subr.bf16.mxu0 0
    %468 = vmatpush2.bf16.msra.mxu0 0
    %469 = vmatprep.subr.bf16.mxu0 0
    %470 = vmatpush2.bf16.msra.mxu0 0
    %471 = vmatprep.subr.bf16.mxu0 0
    %472 = vmatpush2.bf16.msra.mxu0 0
    %473 = vmatprep.mubr.bf16.mxu0 0
    %474 = vmatmul.mubr.bf16.gmra.mxu0 %v332
    %v475 = vpop.f32.mrf.mxu0
    %v476 = vadd.f32 %v354, %v475
    %v477 = vpop.f32.mrf.mxu0
    %v478 = vadd.f32 %v358, %v477
    %v479 = vpop.f32.mrf.mxu0
    %v480 = vpop.f32.mrf.mxu0
    %481 = vdwg.mxu0
    %v482 = vmax.f32 %v476, 0.0
    %v483 = vmax.f32 %v478, 0.0
    %v484 = vpack.c.bf16 %v482, %v482
    %v485 = vpack.c.bf16 %v483, %v483
    %v486 = vld [vmem:[#allocation13] sm:$0xff]
    %v487 = vld [vmem:[#allocation13 + $0x8] sm:$0xff]
    %v488 = vld [vmem:[#allocation13 + $0x10] sm:$0xff]
    %v489 = vld [vmem:[#allocation13 + $0x18] sm:$0xff]
    %v490 = vld [vmem:[#allocation13 + $0x20] sm:$0xff]
    %v491 = vld [vmem:[#allocation13 + $0x28] sm:$0xff]
    %v492 = vld [vmem:[#allocation13 + $0x30] sm:$0xff]
    %v493 = vld [vmem:[#allocation13 + $0x38] sm:$0xff]
    %v494 = vld [vmem:[#allocation13 + $0x40] sm:$0xff]
    %v495 = vld [vmem:[#allocation13 + $0x48] sm:$0xff]
    %v496 = vld [vmem:[#allocation13 + $0x50] sm:$0xff]
    %v497 = vld [vmem:[#allocation13 + $0x58] sm:$0xff]
    %v498 = vld [vmem:[#allocation13 + $0x60] sm:$0xff]
    %v499 = vld [vmem:[#allocation13 + $0x68] sm:$0xff]
    %v500 = vld [vmem:[#allocation13 + $0x70] sm:$0xff]
    %v501 = vld [vmem:[#allocation13 + $0x78] sm:$0xff]
    %v502 = vld [vmem:[#allocation13 + $0x80] sm:$0xff]
    %v503 = vld [vmem:[#allocation13 + $0x88] sm:$0xff]
    %v504 = vld [vmem:[#allocation13 + $0x90] sm:$0xff]
    %v505 = vld [vmem:[#allocation13 + $0x98] sm:$0xff]
    %v506 = vld [vmem:[#allocation13 + $0xa0] sm:$0xff]
    %v507 = vld [vmem:[#allocation13 + $0xa8] sm:$0xff]
    %v508 = vld [vmem:[#allocation13 + $0xb0] sm:$0xff]
    %v509 = vld [vmem:[#allocation13 + $0xb8] sm:$0xff]
    %v510 = vld [vmem:[#allocation13 + $0xc0] sm:$0xff]
    %v511 = vld [vmem:[#allocation13 + $0xc8] sm:$0xff]
    %v512 = vld [vmem:[#allocation13 + $0xd0] sm:$0xff]
    %v513 = vld [vmem:[#allocation13 + $0xd8] sm:$0xff]
    %v514 = vld [vmem:[#allocation13 + $0xe0] sm:$0xff]
    %v515 = vld [vmem:[#allocation13 + $0xe8] sm:$0xff]
    %v516 = vld [vmem:[#allocation13 + $0xf0] sm:$0xff]
    %v517 = vld [vmem:[#allocation13 + $0xf8] sm:$0xff]
    %v518 = vld [vmem:[#allocation13 + $0x100] sm:$0xff]
    %v519 = vld [vmem:[#allocation13 + $0x108] sm:$0xff]
    %v520 = vld [vmem:[#allocation13 + $0x110] sm:$0xff]
    %v521 = vld [vmem:[#allocation13 + $0x118] sm:$0xff]
    %v522 = vld [vmem:[#allocation13 + $0x120] sm:$0xff]
    %v523 = vld [vmem:[#allocation13 + $0x128] sm:$0xff]
    %v524 = vld [vmem:[#allocation13 + $0x130] sm:$0xff]
    %v525 = vld [vmem:[#allocation13 + $0x138] sm:$0xff]
    %v526 = vld [vmem:[#allocation13 + $0x140] sm:$0xff]
    %v527 = vld [vmem:[#allocation13 + $0x148] sm:$0xff]
    %v528 = vld [vmem:[#allocation13 + $0x150] sm:$0xff]
    %v529 = vld [vmem:[#allocation13 + $0x158] sm:$0xff]
    %v530 = vld [vmem:[#allocation13 + $0x160] sm:$0xff]
    %v531 = vld [vmem:[#allocation13 + $0x168] sm:$0xff]
    %v532 = vld [vmem:[#allocation13 + $0x170] sm:$0xff]
    %v533 = vld [vmem:[#allocation13 + $0x178] sm:$0xff]
    %v534 = vld [vmem:[#allocation13 + $0x180] sm:$0xff]
    %v535 = vld [vmem:[#allocation13 + $0x188] sm:$0xff]
    %v536 = vld [vmem:[#allocation13 + $0x190] sm:$0xff]
    %v537 = vld [vmem:[#allocation13 + $0x198] sm:$0xff]
    %v538 = vld [vmem:[#allocation13 + $0x1a0] sm:$0xff]
    %v539 = vld [vmem:[#allocation13 + $0x1a8] sm:$0xff]
    %v540 = vld [vmem:[#allocation13 + $0x1b0] sm:$0xff]
    %v541 = vld [vmem:[#allocation13 + $0x1b8] sm:$0xff]
    %v542 = vld [vmem:[#allocation13 + $0x1c0] sm:$0xff]
    %v543 = vld [vmem:[#allocation13 + $0x1c8] sm:$0xff]
    %v544 = vld [vmem:[#allocation13 + $0x1d0] sm:$0xff]
    %v545 = vld [vmem:[#allocation13 + $0x1d8] sm:$0xff]
    %v546 = vld [vmem:[#allocation13 + $0x1e0] sm:$0xff]
    %v547 = vld [vmem:[#allocation13 + $0x1e8] sm:$0xff]
    %v548 = vld [vmem:[#allocation13 + $0x1f0] sm:$0xff]
    %v549 = vld [vmem:[#allocation13 + $0x1f8] sm:$0xff]
    %v550 = vld [vmem:[%s8] sm:$0xf]
    %v552 = vlaneseq
    %v553 = vshrl.u32 %v552, 7
    %v554 = vsub.s32 0, %v553
    %v555 = vrot.slane %v550, %v554
    %v556 = vlaneseq
    %v557 = vshrl.u32 %v556, 7
    %v558 = vsub.s32 1, %v557
    %v559 = vrot.slane %v550, %v558
    %v560 = vlaneseq
    %v561 = vshrl.u32 %v560, 7
    %v562 = vsub.s32 2, %v561
    %v563 = vrot.slane %v550, %v562
    %v564 = vlaneseq
    %v565 = vshrl.u32 %v564, 7
    %v566 = vsub.s32 3, %v565
    %v567 = vrot.slane %v550, %v566
    %v636 = vunpack.c.l.b16 %v486
    %v637 = vunpack.c.h.b16 %v486
    %v638 = vunpack.c.l.b16 %v487
    %v639 = vunpack.c.h.b16 %v487
    %v640 = vunpack.c.l.b16 %v488
    %v641 = vunpack.c.h.b16 %v488
    %v642 = vunpack.c.l.b16 %v489
    %v643 = vunpack.c.h.b16 %v489
    %v644 = vunpack.c.l.b16 %v490
    %v645 = vunpack.c.h.b16 %v490
    %v646 = vunpack.c.l.b16 %v491
    %v647 = vunpack.c.h.b16 %v491
    %v648 = vunpack.c.l.b16 %v492
    %v649 = vunpack.c.h.b16 %v492
    %v650 = vunpack.c.l.b16 %v493
    %v651 = vunpack.c.h.b16 %v493
    %v652 = vunpack.c.l.b16 %v494
    %v653 = vunpack.c.h.b16 %v494
    %v654 = vunpack.c.l.b16 %v495
    %v655 = vunpack.c.h.b16 %v495
    %v656 = vunpack.c.l.b16 %v496
    %v657 = vunpack.c.h.b16 %v496
    %v658 = vunpack.c.l.b16 %v497
    %v659 = vunpack.c.h.b16 %v497
    %v660 = vunpack.c.l.b16 %v498
    %v661 = vunpack.c.h.b16 %v498
    %v662 = vunpack.c.l.b16 %v499
    %v663 = vunpack.c.h.b16 %v499
    %v664 = vunpack.c.l.b16 %v500
    %v665 = vunpack.c.h.b16 %v500
    %v666 = vunpack.c.l.b16 %v501
    %v667 = vunpack.c.h.b16 %v501
    %v668 = vunpack.c.l.b16 %v502
    %v669 = vunpack.c.h.b16 %v502
    %v670 = vunpack.c.l.b16 %v503
    %v671 = vunpack.c.h.b16 %v503
    %v672 = vunpack.c.l.b16 %v504
    %v673 = vunpack.c.h.b16 %v504
    %v674 = vunpack.c.l.b16 %v505
    %v675 = vunpack.c.h.b16 %v505
    %v676 = vunpack.c.l.b16 %v506
    %v677 = vunpack.c.h.b16 %v506
    %v678 = vunpack.c.l.b16 %v507
    %v679 = vunpack.c.h.b16 %v507
    %v680 = vunpack.c.l.b16 %v508
    %v681 = vunpack.c.h.b16 %v508
    %v682 = vunpack.c.l.b16 %v509
    %v683 = vunpack.c.h.b16 %v509
    %v684 = vunpack.c.l.b16 %v510
    %v685 = vunpack.c.h.b16 %v510
    %v686 = vunpack.c.l.b16 %v511
    %v687 = vunpack.c.h.b16 %v511
    %v688 = vunpack.c.l.b16 %v512
    %v689 = vunpack.c.h.b16 %v512
    %v690 = vunpack.c.l.b16 %v513
    %v691 = vunpack.c.h.b16 %v513
    %v692 = vunpack.c.l.b16 %v514
    %v693 = vunpack.c.h.b16 %v514
    %v694 = vunpack.c.l.b16 %v515
    %v695 = vunpack.c.h.b16 %v515
    %v696 = vunpack.c.l.b16 %v516
    %v697 = vunpack.c.h.b16 %v516
    %v698 = vunpack.c.l.b16 %v517
    %v699 = vunpack.c.h.b16 %v517
    %v700 = vunpack.c.l.b16 %v518
    %v701 = vunpack.c.h.b16 %v518
    %v702 = vunpack.c.l.b16 %v519
    %v703 = vunpack.c.h.b16 %v519
    %v704 = vunpack.c.l.b16 %v520
    %v705 = vunpack.c.h.b16 %v520
    %v706 = vunpack.c.l.b16 %v521
    %v707 = vunpack.c.h.b16 %v521
    %v708 = vunpack.c.l.b16 %v522
    %v709 = vunpack.c.h.b16 %v522
    %v710 = vunpack.c.l.b16 %v523
    %v711 = vunpack.c.h.b16 %v523
    %v712 = vunpack.c.l.b16 %v524
    %v713 = vunpack.c.h.b16 %v524
    %v714 = vunpack.c.l.b16 %v525
    %v715 = vunpack.c.h.b16 %v525
    %v716 = vunpack.c.l.b16 %v526
    %v717 = vunpack.c.h.b16 %v526
    %v718 = vunpack.c.l.b16 %v527
    %v719 = vunpack.c.h.b16 %v527
    %v720 = vunpack.c.l.b16 %v528
    %v721 = vunpack.c.h.b16 %v528
    %v722 = vunpack.c.l.b16 %v529
    %v723 = vunpack.c.h.b16 %v529
    %v724 = vunpack.c.l.b16 %v530
    %v725 = vunpack.c.h.b16 %v530
    %v726 = vunpack.c.l.b16 %v531
    %v727 = vunpack.c.h.b16 %v531
    %v728 = vunpack.c.l.b16 %v532
    %v729 = vunpack.c.h.b16 %v532
    %v730 = vunpack.c.l.b16 %v533
    %v731 = vunpack.c.h.b16 %v533
    %v732 = vunpack.c.l.b16 %v534
    %v733 = vunpack.c.h.b16 %v534
    %v734 = vunpack.c.l.b16 %v535
    %v735 = vunpack.c.h.b16 %v535
    %v736 = vunpack.c.l.b16 %v536
    %v737 = vunpack.c.h.b16 %v536
    %v738 = vunpack.c.l.b16 %v537
    %v739 = vunpack.c.h.b16 %v537
    %v740 = vunpack.c.l.b16 %v538
    %v741 = vunpack.c.h.b16 %v538
    %v742 = vunpack.c.l.b16 %v539
    %v743 = vunpack.c.h.b16 %v539
    %v744 = vunpack.c.l.b16 %v540
    %v745 = vunpack.c.h.b16 %v540
    %v746 = vunpack.c.l.b16 %v541
    %v747 = vunpack.c.h.b16 %v541
    %v748 = vunpack.c.l.b16 %v542
    %v749 = vunpack.c.h.b16 %v542
    %v750 = vunpack.c.l.b16 %v543
    %v751 = vunpack.c.h.b16 %v543
    %v752 = vunpack.c.l.b16 %v544
    %v753 = vunpack.c.h.b16 %v544
    %v754 = vunpack.c.l.b16 %v545
    %v755 = vunpack.c.h.b16 %v545
    %v756 = vunpack.c.l.b16 %v546
    %v757 = vunpack.c.h.b16 %v546
    %v758 = vunpack.c.l.b16 %v547
    %v759 = vunpack.c.h.b16 %v547
    %v760 = vunpack.c.l.b16 %v548
    %v761 = vunpack.c.h.b16 %v548
    %v762 = vunpack.c.l.b16 %v549
    %v763 = vunpack.c.h.b16 %v549
    %v764 = vpack.c.b16 %v640, %v636
    %v765 = vpack.c.b16 %v641, %v637
    %v766 = vpack.c.b16 %v642, %v638
    %v767 = vpack.c.b16 %v643, %v639
    %v768 = vpack.c.b16 %v648, %v644
    %v769 = vpack.c.b16 %v649, %v645
    %v770 = vpack.c.b16 %v650, %v646
    %v771 = vpack.c.b16 %v651, %v647
    %v772 = vpack.c.b16 %v656, %v652
    %v773 = vpack.c.b16 %v657, %v653
    %v774 = vpack.c.b16 %v658, %v654
    %v775 = vpack.c.b16 %v659, %v655
    %v776 = vpack.c.b16 %v664, %v660
    %v777 = vpack.c.b16 %v665, %v661
    %v778 = vpack.c.b16 %v666, %v662
    %v779 = vpack.c.b16 %v667, %v663
    %v780 = vpack.c.b16 %v672, %v668
    %v781 = vpack.c.b16 %v673, %v669
    %v782 = vpack.c.b16 %v674, %v670
    %v783 = vpack.c.b16 %v675, %v671
    %v784 = vpack.c.b16 %v680, %v676
    %v785 = vpack.c.b16 %v681, %v677
    %v786 = vpack.c.b16 %v682, %v678
    %v787 = vpack.c.b16 %v683, %v679
    %v788 = vpack.c.b16 %v688, %v684
    %v789 = vpack.c.b16 %v689, %v685
    %v790 = vpack.c.b16 %v690, %v686
    %v791 = vpack.c.b16 %v691, %v687
    %v792 = vpack.c.b16 %v696, %v692
    %v793 = vpack.c.b16 %v697, %v693
    %v794 = vpack.c.b16 %v698, %v694
    %v795 = vpack.c.b16 %v699, %v695
    %v796 = vpack.c.b16 %v704, %v700
    %v797 = vpack.c.b16 %v705, %v701
    %v798 = vpack.c.b16 %v706, %v702
    %v799 = vpack.c.b16 %v707, %v703
    %v800 = vpack.c.b16 %v712, %v708
    %v801 = vpack.c.b16 %v713, %v709
    %v802 = vpack.c.b16 %v714, %v710
    %v803 = vpack.c.b16 %v715, %v711
    %v804 = vpack.c.b16 %v720, %v716
    %v805 = vpack.c.b16 %v721, %v717
    %v806 = vpack.c.b16 %v722, %v718
    %v807 = vpack.c.b16 %v723, %v719
    %v808 = vpack.c.b16 %v728, %v724
    %v809 = vpack.c.b16 %v729, %v725
    %v810 = vpack.c.b16 %v730, %v726
    %v811 = vpack.c.b16 %v731, %v727
    %v812 = vpack.c.b16 %v736, %v732
    %v813 = vpack.c.b16 %v737, %v733
    %v814 = vpack.c.b16 %v738, %v734
    %v815 = vpack.c.b16 %v739, %v735
    %v816 = vpack.c.b16 %v744, %v740
    %v817 = vpack.c.b16 %v745, %v741
    %v818 = vpack.c.b16 %v746, %v742
    %v819 = vpack.c.b16 %v747, %v743
    %v820 = vpack.c.b16 %v752, %v748
    %v821 = vpack.c.b16 %v753, %v749
    %v822 = vpack.c.b16 %v754, %v750
    %v823 = vpack.c.b16 %v755, %v751
    %v824 = vpack.c.b16 %v760, %v756
    %v825 = vpack.c.b16 %v761, %v757
    %v826 = vpack.c.b16 %v762, %v758
    %v827 = vpack.c.b16 %v763, %v759
    %892 = vmatprep.subr.bf16.mxu0 %v793
    %893 = vmatpush1.bf16.msra.mxu0 %v792
    %894 = vmatprep.subr.bf16.mxu0 %v789
    %895 = vmatpush1.bf16.msra.mxu0 %v788
    %896 = vmatprep.subr.bf16.mxu0 %v785
    %897 = vmatpush1.bf16.msra.mxu0 %v784
    %898 = vmatprep.subr.bf16.mxu0 %v781
    %899 = vmatpush1.bf16.msra.mxu0 %v780
    %900 = vmatprep.subr.bf16.mxu0 %v777
    %901 = vmatpush1.bf16.msra.mxu0 %v776
    %902 = vmatprep.subr.bf16.mxu0 %v773
    %903 = vmatpush1.bf16.msra.mxu0 %v772
    %904 = vmatprep.subr.bf16.mxu0 %v769
    %905 = vmatpush1.bf16.msra.mxu0 %v768
    %906 = vmatprep.subr.bf16.mxu0 %v765
    %907 = vmatpush1.bf16.msra.mxu0 %v764
    %908 = vmatprep.subr.bf16.mxu0 %v825
    %909 = vmatpush2.bf16.msra.mxu0 %v824
    %910 = vmatprep.subr.bf16.mxu0 %v821
    %911 = vmatpush2.bf16.msra.mxu0 %v820
    %912 = vmatprep.subr.bf16.mxu0 %v817
    %913 = vmatpush2.bf16.msra.mxu0 %v816
    %914 = vmatprep.subr.bf16.mxu0 %v813
    %915 = vmatpush2.bf16.msra.mxu0 %v812
    %916 = vmatprep.subr.bf16.mxu0 %v809
    %917 = vmatpush2.bf16.msra.mxu0 %v808
    %918 = vmatprep.subr.bf16.mxu0 %v805
    %919 = vmatpush2.bf16.msra.mxu0 %v804
    %920 = vmatprep.subr.bf16.mxu0 %v801
    %921 = vmatpush2.bf16.msra.mxu0 %v800
    %922 = vmatprep.subr.bf16.mxu0 %v797
    %923 = vmatpush2.bf16.msra.mxu0 %v796
    %924 = vmatprep.mubr.bf16.mxu0 %v485
    %925 = vmatmul.mubr.bf16.gmra.mxu0 %v484
    %v926 = vpop.f32.mrf.mxu0
    %v927 = vadd.f32 %v555, %v926
    %v928 = vpop.f32.mrf.mxu0
    %v929 = vadd.f32 %v559, %v928
    %v930 = vpop.f32.mrf.mxu0
    %v931 = vpop.f32.mrf.mxu0
    %932 = vdwg.mxu0
    %933 = vmatprep.subr.bf16.mxu0 %v795
    %934 = vmatpush1.bf16.msra.mxu0 %v794
    %935 = vmatprep.subr.bf16.mxu0 %v791
    %936 = vmatpush1.bf16.msra.mxu0 %v790
    %937 = vmatprep.subr.bf16.mxu0 %v787
    %938 = vmatpush1.bf16.msra.mxu0 %v786
    %939 = vmatprep.subr.bf16.mxu0 %v783
    %940 = vmatpush1.bf16.msra.mxu0 %v782
    %941 = vmatprep.subr.bf16.mxu0 %v779
    %942 = vmatpush1.bf16.msra.mxu0 %v778
    %943 = vmatprep.subr.bf16.mxu0 %v775
    %944 = vmatpush1.bf16.msra.mxu0 %v774
    %945 = vmatprep.subr.bf16.mxu0 %v771
    %946 = vmatpush1.bf16.msra.mxu0 %v770
    %947 = vmatprep.subr.bf16.mxu0 %v767
    %948 = vmatpush1.bf16.msra.mxu0 %v766
    %949 = vmatprep.subr.bf16.mxu0 %v827
    %950 = vmatpush2.bf16.msra.mxu0 %v826
    %951 = vmatprep.subr.bf16.mxu0 %v823
    %952 = vmatpush2.bf16.msra.mxu0 %v822
    %953 = vmatprep.subr.bf16.mxu0 %v819
    %954 = vmatpush2.bf16.msra.mxu0 %v818
    %955 = vmatprep.subr.bf16.mxu0 %v815
    %956 = vmatpush2.bf16.msra.mxu0 %v814
    %957 = vmatprep.subr.bf16.mxu0 %v811
    %958 = vmatpush2.bf16.msra.mxu0 %v810
    %959 = vmatprep.subr.bf16.mxu0 %v807
    %960 = vmatpush2.bf16.msra.mxu0 %v806
    %961 = vmatprep.subr.bf16.mxu0 %v803
    %962 = vmatpush2.bf16.msra.mxu0 %v802
    %963 = vmatprep.subr.bf16.mxu0 %v799
    %964 = vmatpush2.bf16.msra.mxu0 %v798
    %965 = vmatprep.mubr.bf16.mxu0 %v485
    %966 = vmatmul.mubr.bf16.gmra.mxu0 %v484
    %v967 = vpop.f32.mrf.mxu0
    %v968 = vadd.f32 %v563, %v967
    %v969 = vpop.f32.mrf.mxu0
    %v970 = vadd.f32 %v567, %v969
    %v971 = vpop.f32.mrf.mxu0
    %v972 = vpop.f32.mrf.mxu0
    %973 = vdwg.mxu0
    %v974 = vmax.f32 %v927, 0.0
    %v975 = vmax.f32 %v929, 0.0
    %v976 = vmax.f32 %v968, 0.0
    %v977 = vmax.f32 %v970, 0.0
    %v978 = vpack.c.bf16 %v974, %v974
    %v979 = vpack.c.bf16 %v975, %v975
    %v980 = vpack.c.bf16 %v976, %v976
    %v981 = vpack.c.bf16 %v977, %v977
    %v982 = vld [vmem:[#allocation14] sm:$0xff]
    %v983 = vld [vmem:[#allocation14 + $0x8] sm:$0xff]
    %v984 = vld [vmem:[#allocation14 + $0x10] sm:$0xff]
    %v985 = vld [vmem:[#allocation14 + $0x18] sm:$0xff]
    %v986 = vld [vmem:[#allocation14 + $0x20] sm:$0xff]
    %v987 = vld [vmem:[#allocation14 + $0x28] sm:$0xff]
    %v988 = vld [vmem:[#allocation14 + $0x30] sm:$0xff]
    %v989 = vld [vmem:[#allocation14 + $0x38] sm:$0xff]
    %v990 = vld [vmem:[#allocation14 + $0x40] sm:$0xff]
    %v991 = vld [vmem:[#allocation14 + $0x48] sm:$0xff]
    %v992 = vld [vmem:[#allocation14 + $0x50] sm:$0xff]
    %v993 = vld [vmem:[#allocation14 + $0x58] sm:$0xff]
    %v994 = vld [vmem:[#allocation14 + $0x60] sm:$0xff]
    %v995 = vld [vmem:[#allocation14 + $0x68] sm:$0xff]
    %v996 = vld [vmem:[#allocation14 + $0x70] sm:$0xff]
    %v997 = vld [vmem:[#allocation14 + $0x78] sm:$0xff]
    %v998 = vld [vmem:[#allocation14 + $0x80] sm:$0xff]
    %v999 = vld [vmem:[#allocation14 + $0x88] sm:$0xff]
    %v1000 = vld [vmem:[#allocation14 + $0x90] sm:$0xff]
    %v1001 = vld [vmem:[#allocation14 + $0x98] sm:$0xff]
    %v1002 = vld [vmem:[#allocation14 + $0xa0] sm:$0xff]
    %v1003 = vld [vmem:[#allocation14 + $0xa8] sm:$0xff]
    %v1004 = vld [vmem:[#allocation14 + $0xb0] sm:$0xff]
    %v1005 = vld [vmem:[#allocation14 + $0xb8] sm:$0xff]
    %v1006 = vld [vmem:[#allocation14 + $0xc0] sm:$0xff]
    %v1007 = vld [vmem:[#allocation14 + $0xc8] sm:$0xff]
    %v1008 = vld [vmem:[#allocation14 + $0xd0] sm:$0xff]
    %v1009 = vld [vmem:[#allocation14 + $0xd8] sm:$0xff]
    %v1010 = vld [vmem:[#allocation14 + $0xe0] sm:$0xff]
    %v1011 = vld [vmem:[#allocation14 + $0xe8] sm:$0xff]
    %v1012 = vld [vmem:[#allocation14 + $0xf0] sm:$0xff]
    %v1013 = vld [vmem:[#allocation14 + $0xf8] sm:$0xff]
    %v1014 = vld [vmem:[#allocation14 + $0x100] sm:$0xff]
    %v1015 = vld [vmem:[#allocation14 + $0x108] sm:$0xff]
    %v1016 = vld [vmem:[#allocation14 + $0x110] sm:$0xff]
    %v1017 = vld [vmem:[#allocation14 + $0x118] sm:$0xff]
    %v1018 = vld [vmem:[#allocation14 + $0x120] sm:$0xff]
    %v1019 = vld [vmem:[#allocation14 + $0x128] sm:$0xff]
    %v1020 = vld [vmem:[#allocation14 + $0x130] sm:$0xff]
    %v1021 = vld [vmem:[#allocation14 + $0x138] sm:$0xff]
    %v1022 = vld [vmem:[#allocation14 + $0x140] sm:$0xff]
    %v1023 = vld [vmem:[#allocation14 + $0x148] sm:$0xff]
    %v1024 = vld [vmem:[#allocation14 + $0x150] sm:$0xff]
    %v1025 = vld [vmem:[#allocation14 + $0x158] sm:$0xff]
    %v1026 = vld [vmem:[#allocation14 + $0x160] sm:$0xff]
    %v1027 = vld [vmem:[#allocation14 + $0x168] sm:$0xff]
    %v1028 = vld [vmem:[#allocation14 + $0x170] sm:$0xff]
    %v1029 = vld [vmem:[#allocation14 + $0x178] sm:$0xff]
    %v1030 = vld [vmem:[#allocation14 + $0x180] sm:$0xff]
    %v1031 = vld [vmem:[#allocation14 + $0x188] sm:$0xff]
    %v1032 = vld [vmem:[#allocation14 + $0x190] sm:$0xff]
    %v1033 = vld [vmem:[#allocation14 + $0x198] sm:$0xff]
    %v1034 = vld [vmem:[#allocation14 + $0x1a0] sm:$0xff]
    %v1035 = vld [vmem:[#allocation14 + $0x1a8] sm:$0xff]
    %v1036 = vld [vmem:[#allocation14 + $0x1b0] sm:$0xff]
    %v1037 = vld [vmem:[#allocation14 + $0x1b8] sm:$0xff]
    %v1038 = vld [vmem:[#allocation14 + $0x1c0] sm:$0xff]
    %v1039 = vld [vmem:[#allocation14 + $0x1c8] sm:$0xff]
    %v1040 = vld [vmem:[#allocation14 + $0x1d0] sm:$0xff]
    %v1041 = vld [vmem:[#allocation14 + $0x1d8] sm:$0xff]
    %v1042 = vld [vmem:[#allocation14 + $0x1e0] sm:$0xff]
    %v1043 = vld [vmem:[#allocation14 + $0x1e8] sm:$0xff]
    %v1044 = vld [vmem:[#allocation14 + $0x1f0] sm:$0xff]
    %v1045 = vld [vmem:[#allocation14 + $0x1f8] sm:$0xff]
    %v1046 = vld [vmem:[#allocation14 + $0x200] sm:$0xff]
    %v1047 = vld [vmem:[#allocation14 + $0x208] sm:$0xff]
    %v1048 = vld [vmem:[#allocation14 + $0x210] sm:$0xff]
    %v1049 = vld [vmem:[#allocation14 + $0x218] sm:$0xff]
    %v1050 = vld [vmem:[#allocation14 + $0x220] sm:$0xff]
    %v1051 = vld [vmem:[#allocation14 + $0x228] sm:$0xff]
    %v1052 = vld [vmem:[#allocation14 + $0x230] sm:$0xff]
    %v1053 = vld [vmem:[#allocation14 + $0x238] sm:$0xff]
    %v1054 = vld [vmem:[#allocation14 + $0x240] sm:$0xff]
    %v1055 = vld [vmem:[#allocation14 + $0x248] sm:$0xff]
    %v1056 = vld [vmem:[#allocation14 + $0x250] sm:$0xff]
    %v1057 = vld [vmem:[#allocation14 + $0x258] sm:$0xff]
    %v1058 = vld [vmem:[#allocation14 + $0x260] sm:$0xff]
    %v1059 = vld [vmem:[#allocation14 + $0x268] sm:$0xff]
    %v1060 = vld [vmem:[#allocation14 + $0x270] sm:$0xff]
    %v1061 = vld [vmem:[#allocation14 + $0x278] sm:$0xff]
    %v1062 = vld [vmem:[#allocation14 + $0x280] sm:$0xff]
    %v1063 = vld [vmem:[#allocation14 + $0x288] sm:$0xff]
    %v1064 = vld [vmem:[#allocation14 + $0x290] sm:$0xff]
    %v1065 = vld [vmem:[#allocation14 + $0x298] sm:$0xff]
    %v1066 = vld [vmem:[#allocation14 + $0x2a0] sm:$0xff]
    %v1067 = vld [vmem:[#allocation14 + $0x2a8] sm:$0xff]
    %v1068 = vld [vmem:[#allocation14 + $0x2b0] sm:$0xff]
    %v1069 = vld [vmem:[#allocation14 + $0x2b8] sm:$0xff]
    %v1070 = vld [vmem:[#allocation14 + $0x2c0] sm:$0xff]
    %v1071 = vld [vmem:[#allocation14 + $0x2c8] sm:$0xff]
    %v1072 = vld [vmem:[#allocation14 + $0x2d0] sm:$0xff]
    %v1073 = vld [vmem:[#allocation14 + $0x2d8] sm:$0xff]
    %v1074 = vld [vmem:[#allocation14 + $0x2e0] sm:$0xff]
    %v1075 = vld [vmem:[#allocation14 + $0x2e8] sm:$0xff]
    %v1076 = vld [vmem:[#allocation14 + $0x2f0] sm:$0xff]
    %v1077 = vld [vmem:[#allocation14 + $0x2f8] sm:$0xff]
    %v1078 = vld [vmem:[#allocation14 + $0x300] sm:$0xff]
    %v1079 = vld [vmem:[#allocation14 + $0x308] sm:$0xff]
    %v1080 = vld [vmem:[#allocation14 + $0x310] sm:$0xff]
    %v1081 = vld [vmem:[#allocation14 + $0x318] sm:$0xff]
    %v1082 = vld [vmem:[#allocation14 + $0x320] sm:$0xff]
    %v1083 = vld [vmem:[#allocation14 + $0x328] sm:$0xff]
    %v1084 = vld [vmem:[#allocation14 + $0x330] sm:$0xff]
    %v1085 = vld [vmem:[#allocation14 + $0x338] sm:$0xff]
    %v1086 = vld [vmem:[#allocation14 + $0x340] sm:$0xff]
    %v1087 = vld [vmem:[#allocation14 + $0x348] sm:$0xff]
    %v1088 = vld [vmem:[#allocation14 + $0x350] sm:$0xff]
    %v1089 = vld [vmem:[#allocation14 + $0x358] sm:$0xff]
    %v1090 = vld [vmem:[#allocation14 + $0x360] sm:$0xff]
    %v1091 = vld [vmem:[#allocation14 + $0x368] sm:$0xff]
    %v1092 = vld [vmem:[#allocation14 + $0x370] sm:$0xff]
    %v1093 = vld [vmem:[#allocation14 + $0x378] sm:$0xff]
    %v1094 = vld [vmem:[#allocation14 + $0x380] sm:$0xff]
    %v1095 = vld [vmem:[#allocation14 + $0x388] sm:$0xff]
    %v1096 = vld [vmem:[#allocation14 + $0x390] sm:$0xff]
    %v1097 = vld [vmem:[#allocation14 + $0x398] sm:$0xff]
    %v1098 = vld [vmem:[#allocation14 + $0x3a0] sm:$0xff]
    %v1099 = vld [vmem:[#allocation14 + $0x3a8] sm:$0xff]
    %v1100 = vld [vmem:[#allocation14 + $0x3b0] sm:$0xff]
    %v1101 = vld [vmem:[#allocation14 + $0x3b8] sm:$0xff]
    %v1102 = vld [vmem:[#allocation14 + $0x3c0] sm:$0xff]
    %v1103 = vld [vmem:[#allocation14 + $0x3c8] sm:$0xff]
    %v1104 = vld [vmem:[#allocation14 + $0x3d0] sm:$0xff]
    %v1105 = vld [vmem:[#allocation14 + $0x3d8] sm:$0xff]
    %v1106 = vld [vmem:[#allocation14 + $0x3e0] sm:$0xff]
    %v1107 = vld [vmem:[#allocation14 + $0x3e8] sm:$0xff]
    %v1108 = vld [vmem:[#allocation14 + $0x3f0] sm:$0xff]
    %v1109 = vld [vmem:[#allocation14 + $0x3f8] sm:$0xff]
    %v1110 = vld [vmem:[%s10] sm:$0xf]
    %v1112 = vlaneseq
    %v1113 = vshrl.u32 %v1112, 7
    %v1114 = vsub.s32 0, %v1113
    %v1115 = vrot.slane %v1110, %v1114
    %v1116 = vlaneseq
    %v1117 = vshrl.u32 %v1116, 7
    %v1118 = vsub.s32 1, %v1117
    %v1119 = vrot.slane %v1110, %v1118
    %v1120 = vlaneseq
    %v1121 = vshrl.u32 %v1120, 7
    %v1122 = vsub.s32 2, %v1121
    %v1123 = vrot.slane %v1110, %v1122
    %v1124 = vlaneseq
    %v1125 = vshrl.u32 %v1124, 7
    %v1126 = vsub.s32 3, %v1125
    %v1127 = vrot.slane %v1110, %v1126
    %v1260 = vunpack.c.l.b16 %v982
    %v1261 = vunpack.c.h.b16 %v982
    %v1262 = vunpack.c.l.b16 %v983
    %v1263 = vunpack.c.h.b16 %v983
    %v1264 = vunpack.c.l.b16 %v984
    %v1265 = vunpack.c.h.b16 %v984
    %v1266 = vunpack.c.l.b16 %v985
    %v1267 = vunpack.c.h.b16 %v985
    %v1268 = vunpack.c.l.b16 %v986
    %v1269 = vunpack.c.h.b16 %v986
    %v1270 = vunpack.c.l.b16 %v987
    %v1271 = vunpack.c.h.b16 %v987
    %v1272 = vunpack.c.l.b16 %v988
    %v1273 = vunpack.c.h.b16 %v988
    %v1274 = vunpack.c.l.b16 %v989
    %v1275 = vunpack.c.h.b16 %v989
    %v1276 = vunpack.c.l.b16 %v990
    %v1277 = vunpack.c.h.b16 %v990
    %v1278 = vunpack.c.l.b16 %v991
    %v1279 = vunpack.c.h.b16 %v991
    %v1280 = vunpack.c.l.b16 %v992
    %v1281 = vunpack.c.h.b16 %v992
    %v1282 = vunpack.c.l.b16 %v993
    %v1283 = vunpack.c.h.b16 %v993
    %v1284 = vunpack.c.l.b16 %v994
    %v1285 = vunpack.c.h.b16 %v994
    %v1286 = vunpack.c.l.b16 %v995
    %v1287 = vunpack.c.h.b16 %v995
    %v1288 = vunpack.c.l.b16 %v996
    %v1289 = vunpack.c.h.b16 %v996
    %v1290 = vunpack.c.l.b16 %v997
    %v1291 = vunpack.c.h.b16 %v997
    %v1292 = vunpack.c.l.b16 %v998
    %v1293 = vunpack.c.h.b16 %v998
    %v1294 = vunpack.c.l.b16 %v999
    %v1295 = vunpack.c.h.b16 %v999
    %v1296 = vunpack.c.l.b16 %v1000
    %v1297 = vunpack.c.h.b16 %v1000
    %v1298 = vunpack.c.l.b16 %v1001
    %v1299 = vunpack.c.h.b16 %v1001
    %v1300 = vunpack.c.l.b16 %v1002
    %v1301 = vunpack.c.h.b16 %v1002
    %v1302 = vunpack.c.l.b16 %v1003
    %v1303 = vunpack.c.h.b16 %v1003
    %v1304 = vunpack.c.l.b16 %v1004
    %v1305 = vunpack.c.h.b16 %v1004
    %v1306 = vunpack.c.l.b16 %v1005
    %v1307 = vunpack.c.h.b16 %v1005
    %v1308 = vunpack.c.l.b16 %v1006
    %v1309 = vunpack.c.h.b16 %v1006
    %v1310 = vunpack.c.l.b16 %v1007
    %v1311 = vunpack.c.h.b16 %v1007
    %v1312 = vunpack.c.l.b16 %v1008
    %v1313 = vunpack.c.h.b16 %v1008
    %v1314 = vunpack.c.l.b16 %v1009
    %v1315 = vunpack.c.h.b16 %v1009
    %v1316 = vunpack.c.l.b16 %v1010
    %v1317 = vunpack.c.h.b16 %v1010
    %v1318 = vunpack.c.l.b16 %v1011
    %v1319 = vunpack.c.h.b16 %v1011
    %v1320 = vunpack.c.l.b16 %v1012
    %v1321 = vunpack.c.h.b16 %v1012
    %v1322 = vunpack.c.l.b16 %v1013
    %v1323 = vunpack.c.h.b16 %v1013
    %v1324 = vunpack.c.l.b16 %v1014
    %v1325 = vunpack.c.h.b16 %v1014
    %v1326 = vunpack.c.l.b16 %v1015
    %v1327 = vunpack.c.h.b16 %v1015
    %v1328 = vunpack.c.l.b16 %v1016
    %v1329 = vunpack.c.h.b16 %v1016
    %v1330 = vunpack.c.l.b16 %v1017
    %v1331 = vunpack.c.h.b16 %v1017
    %v1332 = vunpack.c.l.b16 %v1018
    %v1333 = vunpack.c.h.b16 %v1018
    %v1334 = vunpack.c.l.b16 %v1019
    %v1335 = vunpack.c.h.b16 %v1019
    %v1336 = vunpack.c.l.b16 %v1020
    %v1337 = vunpack.c.h.b16 %v1020
    %v1338 = vunpack.c.l.b16 %v1021
    %v1339 = vunpack.c.h.b16 %v1021
    %v1340 = vunpack.c.l.b16 %v1022
    %v1341 = vunpack.c.h.b16 %v1022
    %v1342 = vunpack.c.l.b16 %v1023
    %v1343 = vunpack.c.h.b16 %v1023
    %v1344 = vunpack.c.l.b16 %v1024
    %v1345 = vunpack.c.h.b16 %v1024
    %v1346 = vunpack.c.l.b16 %v1025
    %v1347 = vunpack.c.h.b16 %v1025
    %v1348 = vunpack.c.l.b16 %v1026
    %v1349 = vunpack.c.h.b16 %v1026
    %v1350 = vunpack.c.l.b16 %v1027
    %v1351 = vunpack.c.h.b16 %v1027
    %v1352 = vunpack.c.l.b16 %v1028
    %v1353 = vunpack.c.h.b16 %v1028
    %v1354 = vunpack.c.l.b16 %v1029
    %v1355 = vunpack.c.h.b16 %v1029
    %v1356 = vunpack.c.l.b16 %v1030
    %v1357 = vunpack.c.h.b16 %v1030
    %v1358 = vunpack.c.l.b16 %v1031
    %v1359 = vunpack.c.h.b16 %v1031
    %v1360 = vunpack.c.l.b16 %v1032
    %v1361 = vunpack.c.h.b16 %v1032
    %v1362 = vunpack.c.l.b16 %v1033
    %v1363 = vunpack.c.h.b16 %v1033
    %v1364 = vunpack.c.l.b16 %v1034
    %v1365 = vunpack.c.h.b16 %v1034
    %v1366 = vunpack.c.l.b16 %v1035
    %v1367 = vunpack.c.h.b16 %v1035
    %v1368 = vunpack.c.l.b16 %v1036
    %v1369 = vunpack.c.h.b16 %v1036
    %v1370 = vunpack.c.l.b16 %v1037
    %v1371 = vunpack.c.h.b16 %v1037
    %v1372 = vunpack.c.l.b16 %v1038
    %v1373 = vunpack.c.h.b16 %v1038
    %v1374 = vunpack.c.l.b16 %v1039
    %v1375 = vunpack.c.h.b16 %v1039
    %v1376 = vunpack.c.l.b16 %v1040
    %v1377 = vunpack.c.h.b16 %v1040
    %v1378 = vunpack.c.l.b16 %v1041
    %v1379 = vunpack.c.h.b16 %v1041
    %v1380 = vunpack.c.l.b16 %v1042
    %v1381 = vunpack.c.h.b16 %v1042
    %v1382 = vunpack.c.l.b16 %v1043
    %v1383 = vunpack.c.h.b16 %v1043
    %v1384 = vunpack.c.l.b16 %v1044
    %v1385 = vunpack.c.h.b16 %v1044
    %v1386 = vunpack.c.l.b16 %v1045
    %v1387 = vunpack.c.h.b16 %v1045
    %v1388 = vunpack.c.l.b16 %v1046
    %v1389 = vunpack.c.h.b16 %v1046
    %v1390 = vunpack.c.l.b16 %v1047
    %v1391 = vunpack.c.h.b16 %v1047
    %v1392 = vunpack.c.l.b16 %v1048
    %v1393 = vunpack.c.h.b16 %v1048
    %v1394 = vunpack.c.l.b16 %v1049
    %v1395 = vunpack.c.h.b16 %v1049
    %v1396 = vunpack.c.l.b16 %v1050
    %v1397 = vunpack.c.h.b16 %v1050
    %v1398 = vunpack.c.l.b16 %v1051
    %v1399 = vunpack.c.h.b16 %v1051
    %v1400 = vunpack.c.l.b16 %v1052
    %v1401 = vunpack.c.h.b16 %v1052
    %v1402 = vunpack.c.l.b16 %v1053
    %v1403 = vunpack.c.h.b16 %v1053
    %v1404 = vunpack.c.l.b16 %v1054
    %v1405 = vunpack.c.h.b16 %v1054
    %v1406 = vunpack.c.l.b16 %v1055
    %v1407 = vunpack.c.h.b16 %v1055
    %v1408 = vunpack.c.l.b16 %v1056
    %v1409 = vunpack.c.h.b16 %v1056
    %v1410 = vunpack.c.l.b16 %v1057
    %v1411 = vunpack.c.h.b16 %v1057
    %v1412 = vunpack.c.l.b16 %v1058
    %v1413 = vunpack.c.h.b16 %v1058
    %v1414 = vunpack.c.l.b16 %v1059
    %v1415 = vunpack.c.h.b16 %v1059
    %v1416 = vunpack.c.l.b16 %v1060
    %v1417 = vunpack.c.h.b16 %v1060
    %v1418 = vunpack.c.l.b16 %v1061
    %v1419 = vunpack.c.h.b16 %v1061
    %v1420 = vunpack.c.l.b16 %v1062
    %v1421 = vunpack.c.h.b16 %v1062
    %v1422 = vunpack.c.l.b16 %v1063
    %v1423 = vunpack.c.h.b16 %v1063
    %v1424 = vunpack.c.l.b16 %v1064
    %v1425 = vunpack.c.h.b16 %v1064
    %v1426 = vunpack.c.l.b16 %v1065
    %v1427 = vunpack.c.h.b16 %v1065
    %v1428 = vunpack.c.l.b16 %v1066
    %v1429 = vunpack.c.h.b16 %v1066
    %v1430 = vunpack.c.l.b16 %v1067
    %v1431 = vunpack.c.h.b16 %v1067
    %v1432 = vunpack.c.l.b16 %v1068
    %v1433 = vunpack.c.h.b16 %v1068
    %v1434 = vunpack.c.l.b16 %v1069
    %v1435 = vunpack.c.h.b16 %v1069
    %v1436 = vunpack.c.l.b16 %v1070
    %v1437 = vunpack.c.h.b16 %v1070
    %v1438 = vunpack.c.l.b16 %v1071
    %v1439 = vunpack.c.h.b16 %v1071
    %v1440 = vunpack.c.l.b16 %v1072
    %v1441 = vunpack.c.h.b16 %v1072
    %v1442 = vunpack.c.l.b16 %v1073
    %v1443 = vunpack.c.h.b16 %v1073
    %v1444 = vunpack.c.l.b16 %v1074
    %v1445 = vunpack.c.h.b16 %v1074
    %v1446 = vunpack.c.l.b16 %v1075
    %v1447 = vunpack.c.h.b16 %v1075
    %v1448 = vunpack.c.l.b16 %v1076
    %v1449 = vunpack.c.h.b16 %v1076
    %v1450 = vunpack.c.l.b16 %v1077
    %v1451 = vunpack.c.h.b16 %v1077
    %v1452 = vunpack.c.l.b16 %v1078
    %v1453 = vunpack.c.h.b16 %v1078
    %v1454 = vunpack.c.l.b16 %v1079
    %v1455 = vunpack.c.h.b16 %v1079
    %v1456 = vunpack.c.l.b16 %v1080
    %v1457 = vunpack.c.h.b16 %v1080
    %v1458 = vunpack.c.l.b16 %v1081
    %v1459 = vunpack.c.h.b16 %v1081
    %v1460 = vunpack.c.l.b16 %v1082
    %v1461 = vunpack.c.h.b16 %v1082
    %v1462 = vunpack.c.l.b16 %v1083
    %v1463 = vunpack.c.h.b16 %v1083
    %v1464 = vunpack.c.l.b16 %v1084
    %v1465 = vunpack.c.h.b16 %v1084
    %v1466 = vunpack.c.l.b16 %v1085
    %v1467 = vunpack.c.h.b16 %v1085
    %v1468 = vunpack.c.l.b16 %v1086
    %v1469 = vunpack.c.h.b16 %v1086
    %v1470 = vunpack.c.l.b16 %v1087
    %v1471 = vunpack.c.h.b16 %v1087
    %v1472 = vunpack.c.l.b16 %v1088
    %v1473 = vunpack.c.h.b16 %v1088
    %v1474 = vunpack.c.l.b16 %v1089
    %v1475 = vunpack.c.h.b16 %v1089
    %v1476 = vunpack.c.l.b16 %v1090
    %v1477 = vunpack.c.h.b16 %v1090
    %v1478 = vunpack.c.l.b16 %v1091
    %v1479 = vunpack.c.h.b16 %v1091
    %v1480 = vunpack.c.l.b16 %v1092
    %v1481 = vunpack.c.h.b16 %v1092
    %v1482 = vunpack.c.l.b16 %v1093
    %v1483 = vunpack.c.h.b16 %v1093
    %v1484 = vunpack.c.l.b16 %v1094
    %v1485 = vunpack.c.h.b16 %v1094
    %v1486 = vunpack.c.l.b16 %v1095
    %v1487 = vunpack.c.h.b16 %v1095
    %v1488 = vunpack.c.l.b16 %v1096
    %v1489 = vunpack.c.h.b16 %v1096
    %v1490 = vunpack.c.l.b16 %v1097
    %v1491 = vunpack.c.h.b16 %v1097
    %v1492 = vunpack.c.l.b16 %v1098
    %v1493 = vunpack.c.h.b16 %v1098
    %v1494 = vunpack.c.l.b16 %v1099
    %v1495 = vunpack.c.h.b16 %v1099
    %v1496 = vunpack.c.l.b16 %v1100
    %v1497 = vunpack.c.h.b16 %v1100
    %v1498 = vunpack.c.l.b16 %v1101
    %v1499 = vunpack.c.h.b16 %v1101
    %v1500 = vunpack.c.l.b16 %v1102
    %v1501 = vunpack.c.h.b16 %v1102
    %v1502 = vunpack.c.l.b16 %v1103
    %v1503 = vunpack.c.h.b16 %v1103
    %v1504 = vunpack.c.l.b16 %v1104
    %v1505 = vunpack.c.h.b16 %v1104
    %v1506 = vunpack.c.l.b16 %v1105
    %v1507 = vunpack.c.h.b16 %v1105
    %v1508 = vunpack.c.l.b16 %v1106
    %v1509 = vunpack.c.h.b16 %v1106
    %v1510 = vunpack.c.l.b16 %v1107
    %v1511 = vunpack.c.h.b16 %v1107
    %v1512 = vunpack.c.l.b16 %v1108
    %v1513 = vunpack.c.h.b16 %v1108
    %v1514 = vunpack.c.l.b16 %v1109
    %v1515 = vunpack.c.h.b16 %v1109
    %v1516 = vpack.c.b16 %v1264, %v1260
    %v1517 = vpack.c.b16 %v1265, %v1261
    %v1518 = vpack.c.b16 %v1266, %v1262
    %v1519 = vpack.c.b16 %v1267, %v1263
    %v1520 = vpack.c.b16 %v1272, %v1268
    %v1521 = vpack.c.b16 %v1273, %v1269
    %v1522 = vpack.c.b16 %v1274, %v1270
    %v1523 = vpack.c.b16 %v1275, %v1271
    %v1524 = vpack.c.b16 %v1280, %v1276
    %v1525 = vpack.c.b16 %v1281, %v1277
    %v1526 = vpack.c.b16 %v1282, %v1278
    %v1527 = vpack.c.b16 %v1283, %v1279
    %v1528 = vpack.c.b16 %v1288, %v1284
    %v1529 = vpack.c.b16 %v1289, %v1285
    %v1530 = vpack.c.b16 %v1290, %v1286
    %v1531 = vpack.c.b16 %v1291, %v1287
    %v1532 = vpack.c.b16 %v1296, %v1292
    %v1533 = vpack.c.b16 %v1297, %v1293
    %v1534 = vpack.c.b16 %v1298, %v1294
    %v1535 = vpack.c.b16 %v1299, %v1295
    %v1536 = vpack.c.b16 %v1304, %v1300
    %v1537 = vpack.c.b16 %v1305, %v1301
    %v1538 = vpack.c.b16 %v1306, %v1302
    %v1539 = vpack.c.b16 %v1307, %v1303
    %v1540 = vpack.c.b16 %v1312, %v1308
    %v1541 = vpack.c.b16 %v1313, %v1309
    %v1542 = vpack.c.b16 %v1314, %v1310
    %v1543 = vpack.c.b16 %v1315, %v1311
    %v1544 = vpack.c.b16 %v1320, %v1316
    %v1545 = vpack.c.b16 %v1321, %v1317
    %v1546 = vpack.c.b16 %v1322, %v1318
    %v1547 = vpack.c.b16 %v1323, %v1319
    %v1548 = vpack.c.b16 %v1328, %v1324
    %v1549 = vpack.c.b16 %v1329, %v1325
    %v1550 = vpack.c.b16 %v1330, %v1326
    %v1551 = vpack.c.b16 %v1331, %v1327
    %v1552 = vpack.c.b16 %v1336, %v1332
    %v1553 = vpack.c.b16 %v1337, %v1333
    %v1554 = vpack.c.b16 %v1338, %v1334
    %v1555 = vpack.c.b16 %v1339, %v1335
    %v1556 = vpack.c.b16 %v1344, %v1340
    %v1557 = vpack.c.b16 %v1345, %v1341
    %v1558 = vpack.c.b16 %v1346, %v1342
    %v1559 = vpack.c.b16 %v1347, %v1343
    %v1560 = vpack.c.b16 %v1352, %v1348
    %v1561 = vpack.c.b16 %v1353, %v1349
    %v1562 = vpack.c.b16 %v1354, %v1350
    %v1563 = vpack.c.b16 %v1355, %v1351
    %v1564 = vpack.c.b16 %v1360, %v1356
    %v1565 = vpack.c.b16 %v1361, %v1357
    %v1566 = vpack.c.b16 %v1362, %v1358
    %v1567 = vpack.c.b16 %v1363, %v1359
    %v1568 = vpack.c.b16 %v1368, %v1364
    %v1569 = vpack.c.b16 %v1369, %v1365
    %v1570 = vpack.c.b16 %v1370, %v1366
    %v1571 = vpack.c.b16 %v1371, %v1367
    %v1572 = vpack.c.b16 %v1376, %v1372
    %v1573 = vpack.c.b16 %v1377, %v1373
    %v1574 = vpack.c.b16 %v1378, %v1374
    %v1575 = vpack.c.b16 %v1379, %v1375
    %v1576 = vpack.c.b16 %v1384, %v1380
    %v1577 = vpack.c.b16 %v1385, %v1381
    %v1578 = vpack.c.b16 %v1386, %v1382
    %v1579 = vpack.c.b16 %v1387, %v1383
    %v1580 = vpack.c.b16 %v1392, %v1388
    %v1581 = vpack.c.b16 %v1393, %v1389
    %v1582 = vpack.c.b16 %v1394, %v1390
    %v1583 = vpack.c.b16 %v1395, %v1391
    %v1584 = vpack.c.b16 %v1400, %v1396
    %v1585 = vpack.c.b16 %v1401, %v1397
    %v1586 = vpack.c.b16 %v1402, %v1398
    %v1587 = vpack.c.b16 %v1403, %v1399
    %v1588 = vpack.c.b16 %v1408, %v1404
    %v1589 = vpack.c.b16 %v1409, %v1405
    %v1590 = vpack.c.b16 %v1410, %v1406
    %v1591 = vpack.c.b16 %v1411, %v1407
    %v1592 = vpack.c.b16 %v1416, %v1412
    %v1593 = vpack.c.b16 %v1417, %v1413
    %v1594 = vpack.c.b16 %v1418, %v1414
    %v1595 = vpack.c.b16 %v1419, %v1415
    %v1596 = vpack.c.b16 %v1424, %v1420
    %v1597 = vpack.c.b16 %v1425, %v1421
    %v1598 = vpack.c.b16 %v1426, %v1422
    %v1599 = vpack.c.b16 %v1427, %v1423
    %v1600 = vpack.c.b16 %v1432, %v1428
    %v1601 = vpack.c.b16 %v1433, %v1429
    %v1602 = vpack.c.b16 %v1434, %v1430
    %v1603 = vpack.c.b16 %v1435, %v1431
    %v1604 = vpack.c.b16 %v1440, %v1436
    %v1605 = vpack.c.b16 %v1441, %v1437
    %v1606 = vpack.c.b16 %v1442, %v1438
    %v1607 = vpack.c.b16 %v1443, %v1439
    %v1608 = vpack.c.b16 %v1448, %v1444
    %v1609 = vpack.c.b16 %v1449, %v1445
    %v1610 = vpack.c.b16 %v1450, %v1446
    %v1611 = vpack.c.b16 %v1451, %v1447
    %v1612 = vpack.c.b16 %v1456, %v1452
    %v1613 = vpack.c.b16 %v1457, %v1453
    %v1614 = vpack.c.b16 %v1458, %v1454
    %v1615 = vpack.c.b16 %v1459, %v1455
    %v1616 = vpack.c.b16 %v1464, %v1460
    %v1617 = vpack.c.b16 %v1465, %v1461
    %v1618 = vpack.c.b16 %v1466, %v1462
    %v1619 = vpack.c.b16 %v1467, %v1463
    %v1620 = vpack.c.b16 %v1472, %v1468
    %v1621 = vpack.c.b16 %v1473, %v1469
    %v1622 = vpack.c.b16 %v1474, %v1470
    %v1623 = vpack.c.b16 %v1475, %v1471
    %v1624 = vpack.c.b16 %v1480, %v1476
    %v1625 = vpack.c.b16 %v1481, %v1477
    %v1626 = vpack.c.b16 %v1482, %v1478
    %v1627 = vpack.c.b16 %v1483, %v1479
    %v1628 = vpack.c.b16 %v1488, %v1484
    %v1629 = vpack.c.b16 %v1489, %v1485
    %v1630 = vpack.c.b16 %v1490, %v1486
    %v1631 = vpack.c.b16 %v1491, %v1487
    %v1632 = vpack.c.b16 %v1496, %v1492
    %v1633 = vpack.c.b16 %v1497, %v1493
    %v1634 = vpack.c.b16 %v1498, %v1494
    %v1635 = vpack.c.b16 %v1499, %v1495
    %v1636 = vpack.c.b16 %v1504, %v1500
    %v1637 = vpack.c.b16 %v1505, %v1501
    %v1638 = vpack.c.b16 %v1506, %v1502
    %v1639 = vpack.c.b16 %v1507, %v1503
    %v1640 = vpack.c.b16 %v1512, %v1508
    %v1641 = vpack.c.b16 %v1513, %v1509
    %v1642 = vpack.c.b16 %v1514, %v1510
    %v1643 = vpack.c.b16 %v1515, %v1511
    %1772 = vmatprep.subr.bf16.mxu0 %v1545
    %1773 = vmatpush1.bf16.msra.mxu0 %v1544
    %1774 = vmatprep.subr.bf16.mxu0 %v1541
    %1775 = vmatpush1.bf16.msra.mxu0 %v1540
    %1776 = vmatprep.subr.bf16.mxu0 %v1537
    %1777 = vmatpush1.bf16.msra.mxu0 %v1536
    %1778 = vmatprep.subr.bf16.mxu0 %v1533
    %1779 = vmatpush1.bf16.msra.mxu0 %v1532
    %1780 = vmatprep.subr.bf16.mxu0 %v1529
    %1781 = vmatpush1.bf16.msra.mxu0 %v1528
    %1782 = vmatprep.subr.bf16.mxu0 %v1525
    %1783 = vmatpush1.bf16.msra.mxu0 %v1524
    %1784 = vmatprep.subr.bf16.mxu0 %v1521
    %1785 = vmatpush1.bf16.msra.mxu0 %v1520
    %1786 = vmatprep.subr.bf16.mxu0 %v1517
    %1787 = vmatpush1.bf16.msra.mxu0 %v1516
    %1788 = vmatprep.subr.bf16.mxu0 %v1577
    %1789 = vmatpush2.bf16.msra.mxu0 %v1576
    %1790 = vmatprep.subr.bf16.mxu0 %v1573
    %1791 = vmatpush2.bf16.msra.mxu0 %v1572
    %1792 = vmatprep.subr.bf16.mxu0 %v1569
    %1793 = vmatpush2.bf16.msra.mxu0 %v1568
    %1794 = vmatprep.subr.bf16.mxu0 %v1565
    %1795 = vmatpush2.bf16.msra.mxu0 %v1564
    %1796 = vmatprep.subr.bf16.mxu0 %v1561
    %1797 = vmatpush2.bf16.msra.mxu0 %v1560
    %1798 = vmatprep.subr.bf16.mxu0 %v1557
    %1799 = vmatpush2.bf16.msra.mxu0 %v1556
    %1800 = vmatprep.subr.bf16.mxu0 %v1553
    %1801 = vmatpush2.bf16.msra.mxu0 %v1552
    %1802 = vmatprep.subr.bf16.mxu0 %v1549
    %1803 = vmatpush2.bf16.msra.mxu0 %v1548
    %1804 = vmatprep.mubr.bf16.mxu0 %v979
    %1805 = vmatmul.mubr.bf16.gmra.mxu0 %v978
    %v1806 = vpop.f32.mrf.mxu0
    %v1807 = vadd.f32 %v1115, %v1806
    %v1808 = vpop.f32.mrf.mxu0
    %v1809 = vadd.f32 %v1119, %v1808
    %v1810 = vpop.f32.mrf.mxu0
    %v1811 = vpop.f32.mrf.mxu0
    %1812 = vdwg.mxu0
    %1813 = vmatprep.subr.bf16.mxu0 %v1609
    %1814 = vmatpush1.bf16.msra.mxu0 %v1608
    %1815 = vmatprep.subr.bf16.mxu0 %v1605
    %1816 = vmatpush1.bf16.msra.mxu0 %v1604
    %1817 = vmatprep.subr.bf16.mxu0 %v1601
    %1818 = vmatpush1.bf16.msra.mxu0 %v1600
    %1819 = vmatprep.subr.bf16.mxu0 %v1597
    %1820 = vmatpush1.bf16.msra.mxu0 %v1596
    %1821 = vmatprep.subr.bf16.mxu0 %v1593
    %1822 = vmatpush1.bf16.msra.mxu0 %v1592
    %1823 = vmatprep.subr.bf16.mxu0 %v1589
    %1824 = vmatpush1.bf16.msra.mxu0 %v1588
    %1825 = vmatprep.subr.bf16.mxu0 %v1585
    %1826 = vmatpush1.bf16.msra.mxu0 %v1584
    %1827 = vmatprep.subr.bf16.mxu0 %v1581
    %1828 = vmatpush1.bf16.msra.mxu0 %v1580
    %1829 = vmatprep.subr.bf16.mxu0 %v1641
    %1830 = vmatpush2.bf16.msra.mxu0 %v1640
    %1831 = vmatprep.subr.bf16.mxu0 %v1637
    %1832 = vmatpush2.bf16.msra.mxu0 %v1636
    %1833 = vmatprep.subr.bf16.mxu0 %v1633
    %1834 = vmatpush2.bf16.msra.mxu0 %v1632
    %1835 = vmatprep.subr.bf16.mxu0 %v1629
    %1836 = vmatpush2.bf16.msra.mxu0 %v1628
    %1837 = vmatprep.subr.bf16.mxu0 %v1625
    %1838 = vmatpush2.bf16.msra.mxu0 %v1624
    %1839 = vmatprep.subr.bf16.mxu0 %v1621
    %1840 = vmatpush2.bf16.msra.mxu0 %v1620
    %1841 = vmatprep.subr.bf16.mxu0 %v1617
    %1842 = vmatpush2.bf16.msra.mxu0 %v1616
    %1843 = vmatprep.subr.bf16.mxu0 %v1613
    %1844 = vmatpush2.bf16.msra.mxu0 %v1612
    %1845 = vmatprep.mubr.bf16.mxu0 %v981
    %1846 = vmatmul.mubr.bf16.gmra.mxu0 %v980
    %v1847 = vpop.f32.mrf.mxu0
    %v1848 = vadd.f32 %v1807, %v1847
    %v1849 = vpop.f32.mrf.mxu0
    %v1850 = vadd.f32 %v1809, %v1849
    %v1851 = vpop.f32.mrf.mxu0
    %v1852 = vpop.f32.mrf.mxu0
    %1853 = vdwg.mxu0
    %1854 = vmatprep.subr.bf16.mxu0 %v1547
    %1855 = vmatpush1.bf16.msra.mxu0 %v1546
    %1856 = vmatprep.subr.bf16.mxu0 %v1543
    %1857 = vmatpush1.bf16.msra.mxu0 %v1542
    %1858 = vmatprep.subr.bf16.mxu0 %v1539
    %1859 = vmatpush1.bf16.msra.mxu0 %v1538
    %1860 = vmatprep.subr.bf16.mxu0 %v1535
    %1861 = vmatpush1.bf16.msra.mxu0 %v1534
    %1862 = vmatprep.subr.bf16.mxu0 %v1531
    %1863 = vmatpush1.bf16.msra.mxu0 %v1530
    %1864 = vmatprep.subr.bf16.mxu0 %v1527
    %1865 = vmatpush1.bf16.msra.mxu0 %v1526
    %1866 = vmatprep.subr.bf16.mxu0 %v1523
    %1867 = vmatpush1.bf16.msra.mxu0 %v1522
    %1868 = vmatprep.subr.bf16.mxu0 %v1519
    %1869 = vmatpush1.bf16.msra.mxu0 %v1518
    %1870 = vmatprep.subr.bf16.mxu0 %v1579
    %1871 = vmatpush2.bf16.msra.mxu0 %v1578
    %1872 = vmatprep.subr.bf16.mxu0 %v1575
    %1873 = vmatpush2.bf16.msra.mxu0 %v1574
    %1874 = vmatprep.subr.bf16.mxu0 %v1571
    %1875 = vmatpush2.bf16.msra.mxu0 %v1570
    %1876 = vmatprep.subr.bf16.mxu0 %v1567
    %1877 = vmatpush2.bf16.msra.mxu0 %v1566
    %1878 = vmatprep.subr.bf16.mxu0 %v1563
    %1879 = vmatpush2.bf16.msra.mxu0 %v1562
    %1880 = vmatprep.subr.bf16.mxu0 %v1559
    %1881 = vmatpush2.bf16.msra.mxu0 %v1558
    %1882 = vmatprep.subr.bf16.mxu0 %v1555
    %1883 = vmatpush2.bf16.msra.mxu0 %v1554
    %1884 = vmatprep.subr.bf16.mxu0 %v1551
    %1885 = vmatpush2.bf16.msra.mxu0 %v1550
    %1886 = vmatprep.mubr.bf16.mxu0 %v979
    %1887 = vmatmul.mubr.bf16.gmra.mxu0 %v978
    %v1888 = vpop.f32.mrf.mxu0
    %v1889 = vadd.f32 %v1123, %v1888
    %v1890 = vpop.f32.mrf.mxu0
    %v1891 = vadd.f32 %v1127, %v1890
    %v1892 = vpop.f32.mrf.mxu0
    %v1893 = vpop.f32.mrf.mxu0
    %1894 = vdwg.mxu0
    %1895 = vmatprep.subr.bf16.mxu0 %v1611
    %1896 = vmatpush1.bf16.msra.mxu0 %v1610
    %1897 = vmatprep.subr.bf16.mxu0 %v1607
    %1898 = vmatpush1.bf16.msra.mxu0 %v1606
    %1899 = vmatprep.subr.bf16.mxu0 %v1603
    %1900 = vmatpush1.bf16.msra.mxu0 %v1602
    %1901 = vmatprep.subr.bf16.mxu0 %v1599
    %1902 = vmatpush1.bf16.msra.mxu0 %v1598
    %1903 = vmatprep.subr.bf16.mxu0 %v1595
    %1904 = vmatpush1.bf16.msra.mxu0 %v1594
    %1905 = vmatprep.subr.bf16.mxu0 %v1591
    %1906 = vmatpush1.bf16.msra.mxu0 %v1590
    %1907 = vmatprep.subr.bf16.mxu0 %v1587
    %1908 = vmatpush1.bf16.msra.mxu0 %v1586
    %1909 = vmatprep.subr.bf16.mxu0 %v1583
    %1910 = vmatpush1.bf16.msra.mxu0 %v1582
    %1911 = vmatprep.subr.bf16.mxu0 %v1643
    %1912 = vmatpush2.bf16.msra.mxu0 %v1642
    %1913 = vmatprep.subr.bf16.mxu0 %v1639
    %1914 = vmatpush2.bf16.msra.mxu0 %v1638
    %1915 = vmatprep.subr.bf16.mxu0 %v1635
    %1916 = vmatpush2.bf16.msra.mxu0 %v1634
    %1917 = vmatprep.subr.bf16.mxu0 %v1631
    %1918 = vmatpush2.bf16.msra.mxu0 %v1630
    %1919 = vmatprep.subr.bf16.mxu0 %v1627
    %1920 = vmatpush2.bf16.msra.mxu0 %v1626
    %1921 = vmatprep.subr.bf16.mxu0 %v1623
    %1922 = vmatpush2.bf16.msra.mxu0 %v1622
    %1923 = vmatprep.subr.bf16.mxu0 %v1619
    %1924 = vmatpush2.bf16.msra.mxu0 %v1618
    %1925 = vmatprep.subr.bf16.mxu0 %v1615
    %1926 = vmatpush2.bf16.msra.mxu0 %v1614
    %1927 = vmatprep.mubr.bf16.mxu0 %v981
    %1928 = vmatmul.mubr.bf16.gmra.mxu0 %v980
    %v1929 = vpop.f32.mrf.mxu0
    %v1930 = vadd.f32 %v1889, %v1929
    %v1931 = vpop.f32.mrf.mxu0
    %v1932 = vadd.f32 %v1891, %v1931
    %v1933 = vpop.f32.mrf.mxu0
    %v1934 = vpop.f32.mrf.mxu0
    %1935 = vdwg.mxu0
    %v1936 = vmax.f32 %v1848, 0.0
    %v1937 = vmax.f32 %v1850, 0.0
    %v1938 = vmax.f32 %v1930, 0.0
    %v1939 = vmax.f32 %v1932, 0.0
    %v1940 = vpack.c.bf16 %v1936, %v1936
    %v1941 = vpack.c.bf16 %v1937, %v1937
    %v1942 = vpack.c.bf16 %v1938, %v1938
    %v1943 = vpack.c.bf16 %v1939, %v1939
    %v1944 = vld [vmem:[#allocation16] sm:$0xff]
    %v1945 = vld [vmem:[#allocation16 + $0x8] sm:$0xff]
    %v1946 = vld [vmem:[#allocation16 + $0x10] sm:$0xff]
    %v1947 = vld [vmem:[#allocation16 + $0x18] sm:$0xff]
    %v1948 = vld [vmem:[#allocation16 + $0x20] sm:$0xff]
    %v1949 = vld [vmem:[#allocation16 + $0x28] sm:$0xff]
    %v1950 = vld [vmem:[#allocation16 + $0x30] sm:$0xff]
    %v1951 = vld [vmem:[#allocation16 + $0x38] sm:$0xff]
    %v1952 = vld [vmem:[#allocation16 + $0x40] sm:$0xff]
    %v1953 = vld [vmem:[#allocation16 + $0x48] sm:$0xff]
    %v1954 = vld [vmem:[#allocation16 + $0x50] sm:$0xff]
    %v1955 = vld [vmem:[#allocation16 + $0x58] sm:$0xff]
    %v1956 = vld [vmem:[#allocation16 + $0x60] sm:$0xff]
    %v1957 = vld [vmem:[#allocation16 + $0x68] sm:$0xff]
    %v1958 = vld [vmem:[#allocation16 + $0x70] sm:$0xff]
    %v1959 = vld [vmem:[#allocation16 + $0x78] sm:$0xff]
    %v1960 = vld [vmem:[#allocation16 + $0x80] sm:$0xff]
    %v1961 = vld [vmem:[#allocation16 + $0x88] sm:$0xff]
    %v1962 = vld [vmem:[#allocation16 + $0x90] sm:$0xff]
    %v1963 = vld [vmem:[#allocation16 + $0x98] sm:$0xff]
    %v1964 = vld [vmem:[#allocation16 + $0xa0] sm:$0xff]
    %v1965 = vld [vmem:[#allocation16 + $0xa8] sm:$0xff]
    %v1966 = vld [vmem:[#allocation16 + $0xb0] sm:$0xff]
    %v1967 = vld [vmem:[#allocation16 + $0xb8] sm:$0xff]
    %v1968 = vld [vmem:[#allocation16 + $0xc0] sm:$0xff]
    %v1969 = vld [vmem:[#allocation16 + $0xc8] sm:$0xff]
    %v1970 = vld [vmem:[#allocation16 + $0xd0] sm:$0xff]
    %v1971 = vld [vmem:[#allocation16 + $0xd8] sm:$0xff]
    %v1972 = vld [vmem:[#allocation16 + $0xe0] sm:$0xff]
    %v1973 = vld [vmem:[#allocation16 + $0xe8] sm:$0xff]
    %v1974 = vld [vmem:[#allocation16 + $0xf0] sm:$0xff]
    %v1975 = vld [vmem:[#allocation16 + $0xf8] sm:$0xff]
    %v1976 = vld [vmem:[#allocation16 + $0x100] sm:$0xff]
    %v1977 = vld [vmem:[#allocation16 + $0x108] sm:$0xff]
    %v1978 = vld [vmem:[#allocation16 + $0x110] sm:$0xff]
    %v1979 = vld [vmem:[#allocation16 + $0x118] sm:$0xff]
    %v1980 = vld [vmem:[#allocation16 + $0x120] sm:$0xff]
    %v1981 = vld [vmem:[#allocation16 + $0x128] sm:$0xff]
    %v1982 = vld [vmem:[#allocation16 + $0x130] sm:$0xff]
    %v1983 = vld [vmem:[#allocation16 + $0x138] sm:$0xff]
    %v1984 = vld [vmem:[#allocation16 + $0x140] sm:$0xff]
    %v1985 = vld [vmem:[#allocation16 + $0x148] sm:$0xff]
    %v1986 = vld [vmem:[#allocation16 + $0x150] sm:$0xff]
    %v1987 = vld [vmem:[#allocation16 + $0x158] sm:$0xff]
    %v1988 = vld [vmem:[#allocation16 + $0x160] sm:$0xff]
    %v1989 = vld [vmem:[#allocation16 + $0x168] sm:$0xff]
    %v1990 = vld [vmem:[#allocation16 + $0x170] sm:$0xff]
    %v1991 = vld [vmem:[#allocation16 + $0x178] sm:$0xff]
    %v1992 = vld [vmem:[#allocation16 + $0x180] sm:$0xff]
    %v1993 = vld [vmem:[#allocation16 + $0x188] sm:$0xff]
    %v1994 = vld [vmem:[#allocation16 + $0x190] sm:$0xff]
    %v1995 = vld [vmem:[#allocation16 + $0x198] sm:$0xff]
    %v1996 = vld [vmem:[#allocation16 + $0x1a0] sm:$0xff]
    %v1997 = vld [vmem:[#allocation16 + $0x1a8] sm:$0xff]
    %v1998 = vld [vmem:[#allocation16 + $0x1b0] sm:$0xff]
    %v1999 = vld [vmem:[#allocation16 + $0x1b8] sm:$0xff]
    %v2000 = vld [vmem:[#allocation16 + $0x1c0] sm:$0xff]
    %v2001 = vld [vmem:[#allocation16 + $0x1c8] sm:$0xff]
    %v2002 = vld [vmem:[#allocation16 + $0x1d0] sm:$0xff]
    %v2003 = vld [vmem:[#allocation16 + $0x1d8] sm:$0xff]
    %v2004 = vld [vmem:[#allocation16 + $0x1e0] sm:$0xff]
    %v2005 = vld [vmem:[#allocation16 + $0x1e8] sm:$0xff]
    %v2006 = vld [vmem:[#allocation16 + $0x1f0] sm:$0xff]
    %v2007 = vld [vmem:[#allocation16 + $0x1f8] sm:$0xff]
    %v2008 = vld [vmem:[%s12] sm:$0x3]
    %v2010 = vlaneseq
    %v2011 = vshrl.u32 %v2010, 7
    %v2012 = vsub.s32 0, %v2011
    %v2013 = vrot.slane %v2008, %v2012
    %v2014 = vlaneseq
    %v2015 = vshrl.u32 %v2014, 7
    %v2016 = vsub.s32 1, %v2015
    %v2017 = vrot.slane %v2008, %v2016
    %v2084 = vunpack.c.l.b16 %v1944
    %v2085 = vunpack.c.h.b16 %v1944
    %v2086 = vunpack.c.l.b16 %v1945
    %v2087 = vunpack.c.h.b16 %v1945
    %v2088 = vunpack.c.l.b16 %v1946
    %v2089 = vunpack.c.h.b16 %v1946
    %v2090 = vunpack.c.l.b16 %v1947
    %v2091 = vunpack.c.h.b16 %v1947
    %v2092 = vunpack.c.l.b16 %v1948
    %v2093 = vunpack.c.h.b16 %v1948
    %v2094 = vunpack.c.l.b16 %v1949
    %v2095 = vunpack.c.h.b16 %v1949
    %v2096 = vunpack.c.l.b16 %v1950
    %v2097 = vunpack.c.h.b16 %v1950
    %v2098 = vunpack.c.l.b16 %v1951
    %v2099 = vunpack.c.h.b16 %v1951
    %v2100 = vunpack.c.l.b16 %v1952
    %v2101 = vunpack.c.h.b16 %v1952
    %v2102 = vunpack.c.l.b16 %v1953
    %v2103 = vunpack.c.h.b16 %v1953
    %v2104 = vunpack.c.l.b16 %v1954
    %v2105 = vunpack.c.h.b16 %v1954
    %v2106 = vunpack.c.l.b16 %v1955
    %v2107 = vunpack.c.h.b16 %v1955
    %v2108 = vunpack.c.l.b16 %v1956
    %v2109 = vunpack.c.h.b16 %v1956
    %v2110 = vunpack.c.l.b16 %v1957
    %v2111 = vunpack.c.h.b16 %v1957
    %v2112 = vunpack.c.l.b16 %v1958
    %v2113 = vunpack.c.h.b16 %v1958
    %v2114 = vunpack.c.l.b16 %v1959
    %v2115 = vunpack.c.h.b16 %v1959
    %v2116 = vunpack.c.l.b16 %v1960
    %v2117 = vunpack.c.h.b16 %v1960
    %v2118 = vunpack.c.l.b16 %v1961
    %v2119 = vunpack.c.h.b16 %v1961
    %v2120 = vunpack.c.l.b16 %v1962
    %v2121 = vunpack.c.h.b16 %v1962
    %v2122 = vunpack.c.l.b16 %v1963
    %v2123 = vunpack.c.h.b16 %v1963
    %v2124 = vunpack.c.l.b16 %v1964
    %v2125 = vunpack.c.h.b16 %v1964
    %v2126 = vunpack.c.l.b16 %v1965
    %v2127 = vunpack.c.h.b16 %v1965
    %v2128 = vunpack.c.l.b16 %v1966
    %v2129 = vunpack.c.h.b16 %v1966
    %v2130 = vunpack.c.l.b16 %v1967
    %v2131 = vunpack.c.h.b16 %v1967
    %v2132 = vunpack.c.l.b16 %v1968
    %v2133 = vunpack.c.h.b16 %v1968
    %v2134 = vunpack.c.l.b16 %v1969
    %v2135 = vunpack.c.h.b16 %v1969
    %v2136 = vunpack.c.l.b16 %v1970
    %v2137 = vunpack.c.h.b16 %v1970
    %v2138 = vunpack.c.l.b16 %v1971
    %v2139 = vunpack.c.h.b16 %v1971
    %v2140 = vunpack.c.l.b16 %v1972
    %v2141 = vunpack.c.h.b16 %v1972
    %v2142 = vunpack.c.l.b16 %v1973
    %v2143 = vunpack.c.h.b16 %v1973
    %v2144 = vunpack.c.l.b16 %v1974
    %v2145 = vunpack.c.h.b16 %v1974
    %v2146 = vunpack.c.l.b16 %v1975
    %v2147 = vunpack.c.h.b16 %v1975
    %v2148 = vunpack.c.l.b16 %v1976
    %v2149 = vunpack.c.h.b16 %v1976
    %v2150 = vunpack.c.l.b16 %v1977
    %v2151 = vunpack.c.h.b16 %v1977
    %v2152 = vunpack.c.l.b16 %v1978
    %v2153 = vunpack.c.h.b16 %v1978
    %v2154 = vunpack.c.l.b16 %v1979
    %v2155 = vunpack.c.h.b16 %v1979
    %v2156 = vunpack.c.l.b16 %v1980
    %v2157 = vunpack.c.h.b16 %v1980
    %v2158 = vunpack.c.l.b16 %v1981
    %v2159 = vunpack.c.h.b16 %v1981
    %v2160 = vunpack.c.l.b16 %v1982
    %v2161 = vunpack.c.h.b16 %v1982
    %v2162 = vunpack.c.l.b16 %v1983
    %v2163 = vunpack.c.h.b16 %v1983
    %v2164 = vunpack.c.l.b16 %v1984
    %v2165 = vunpack.c.h.b16 %v1984
    %v2166 = vunpack.c.l.b16 %v1985
    %v2167 = vunpack.c.h.b16 %v1985
    %v2168 = vunpack.c.l.b16 %v1986
    %v2169 = vunpack.c.h.b16 %v1986
    %v2170 = vunpack.c.l.b16 %v1987
    %v2171 = vunpack.c.h.b16 %v1987
    %v2172 = vunpack.c.l.b16 %v1988
    %v2173 = vunpack.c.h.b16 %v1988
    %v2174 = vunpack.c.l.b16 %v1989
    %v2175 = vunpack.c.h.b16 %v1989
    %v2176 = vunpack.c.l.b16 %v1990
    %v2177 = vunpack.c.h.b16 %v1990
    %v2178 = vunpack.c.l.b16 %v1991
    %v2179 = vunpack.c.h.b16 %v1991
    %v2180 = vunpack.c.l.b16 %v1992
    %v2181 = vunpack.c.h.b16 %v1992
    %v2182 = vunpack.c.l.b16 %v1993
    %v2183 = vunpack.c.h.b16 %v1993
    %v2184 = vunpack.c.l.b16 %v1994
    %v2185 = vunpack.c.h.b16 %v1994
    %v2186 = vunpack.c.l.b16 %v1995
    %v2187 = vunpack.c.h.b16 %v1995
    %v2188 = vunpack.c.l.b16 %v1996
    %v2189 = vunpack.c.h.b16 %v1996
    %v2190 = vunpack.c.l.b16 %v1997
    %v2191 = vunpack.c.h.b16 %v1997
    %v2192 = vunpack.c.l.b16 %v1998
    %v2193 = vunpack.c.h.b16 %v1998
    %v2194 = vunpack.c.l.b16 %v1999
    %v2195 = vunpack.c.h.b16 %v1999
    %v2196 = vunpack.c.l.b16 %v2000
    %v2197 = vunpack.c.h.b16 %v2000
    %v2198 = vunpack.c.l.b16 %v2001
    %v2199 = vunpack.c.h.b16 %v2001
    %v2200 = vunpack.c.l.b16 %v2002
    %v2201 = vunpack.c.h.b16 %v2002
    %v2202 = vunpack.c.l.b16 %v2003
    %v2203 = vunpack.c.h.b16 %v2003
    %v2204 = vunpack.c.l.b16 %v2004
    %v2205 = vunpack.c.h.b16 %v2004
    %v2206 = vunpack.c.l.b16 %v2005
    %v2207 = vunpack.c.h.b16 %v2005
    %v2208 = vunpack.c.l.b16 %v2006
    %v2209 = vunpack.c.h.b16 %v2006
    %v2210 = vunpack.c.l.b16 %v2007
    %v2211 = vunpack.c.h.b16 %v2007
    %v2212 = vpack.c.b16 %v2086, %v2084
    %v2213 = vpack.c.b16 %v2087, %v2085
    %v2214 = vpack.c.b16 %v2090, %v2088
    %v2215 = vpack.c.b16 %v2091, %v2089
    %v2216 = vpack.c.b16 %v2094, %v2092
    %v2217 = vpack.c.b16 %v2095, %v2093
    %v2218 = vpack.c.b16 %v2098, %v2096
    %v2219 = vpack.c.b16 %v2099, %v2097
    %v2220 = vpack.c.b16 %v2102, %v2100
    %v2221 = vpack.c.b16 %v2103, %v2101
    %v2222 = vpack.c.b16 %v2106, %v2104
    %v2223 = vpack.c.b16 %v2107, %v2105
    %v2224 = vpack.c.b16 %v2110, %v2108
    %v2225 = vpack.c.b16 %v2111, %v2109
    %v2226 = vpack.c.b16 %v2114, %v2112
    %v2227 = vpack.c.b16 %v2115, %v2113
    %v2228 = vpack.c.b16 %v2118, %v2116
    %v2229 = vpack.c.b16 %v2119, %v2117
    %v2230 = vpack.c.b16 %v2122, %v2120
    %v2231 = vpack.c.b16 %v2123, %v2121
    %v2232 = vpack.c.b16 %v2126, %v2124
    %v2233 = vpack.c.b16 %v2127, %v2125
    %v2234 = vpack.c.b16 %v2130, %v2128
    %v2235 = vpack.c.b16 %v2131, %v2129
    %v2236 = vpack.c.b16 %v2134, %v2132
    %v2237 = vpack.c.b16 %v2135, %v2133
    %v2238 = vpack.c.b16 %v2138, %v2136
    %v2239 = vpack.c.b16 %v2139, %v2137
    %v2240 = vpack.c.b16 %v2142, %v2140
    %v2241 = vpack.c.b16 %v2143, %v2141
    %v2242 = vpack.c.b16 %v2146, %v2144
    %v2243 = vpack.c.b16 %v2147, %v2145
    %v2244 = vpack.c.b16 %v2150, %v2148
    %v2245 = vpack.c.b16 %v2151, %v2149
    %v2246 = vpack.c.b16 %v2154, %v2152
    %v2247 = vpack.c.b16 %v2155, %v2153
    %v2248 = vpack.c.b16 %v2158, %v2156
    %v2249 = vpack.c.b16 %v2159, %v2157
    %v2250 = vpack.c.b16 %v2162, %v2160
    %v2251 = vpack.c.b16 %v2163, %v2161
    %v2252 = vpack.c.b16 %v2166, %v2164
    %v2253 = vpack.c.b16 %v2167, %v2165
    %v2254 = vpack.c.b16 %v2170, %v2168
    %v2255 = vpack.c.b16 %v2171, %v2169
    %v2256 = vpack.c.b16 %v2174, %v2172
    %v2257 = vpack.c.b16 %v2175, %v2173
    %v2258 = vpack.c.b16 %v2178, %v2176
    %v2259 = vpack.c.b16 %v2179, %v2177
    %v2260 = vpack.c.b16 %v2182, %v2180
    %v2261 = vpack.c.b16 %v2183, %v2181
    %v2262 = vpack.c.b16 %v2186, %v2184
    %v2263 = vpack.c.b16 %v2187, %v2185
    %v2264 = vpack.c.b16 %v2190, %v2188
    %v2265 = vpack.c.b16 %v2191, %v2189
    %v2266 = vpack.c.b16 %v2194, %v2192
    %v2267 = vpack.c.b16 %v2195, %v2193
    %v2268 = vpack.c.b16 %v2198, %v2196
    %v2269 = vpack.c.b16 %v2199, %v2197
    %v2270 = vpack.c.b16 %v2202, %v2200
    %v2271 = vpack.c.b16 %v2203, %v2201
    %v2272 = vpack.c.b16 %v2206, %v2204
    %v2273 = vpack.c.b16 %v2207, %v2205
    %v2274 = vpack.c.b16 %v2210, %v2208
    %v2275 = vpack.c.b16 %v2211, %v2209
    %2340 = vmatprep.subr.bf16.mxu0 %v2227
    %2341 = vmatpush1.bf16.msra.mxu0 %v2226
    %2342 = vmatprep.subr.bf16.mxu0 %v2225
    %2343 = vmatpush1.bf16.msra.mxu0 %v2224
    %2344 = vmatprep.subr.bf16.mxu0 %v2223
    %2345 = vmatpush1.bf16.msra.mxu0 %v2222
    %2346 = vmatprep.subr.bf16.mxu0 %v2221
    %2347 = vmatpush1.bf16.msra.mxu0 %v2220
    %2348 = vmatprep.subr.bf16.mxu0 %v2219
    %2349 = vmatpush1.bf16.msra.mxu0 %v2218
    %2350 = vmatprep.subr.bf16.mxu0 %v2217
    %2351 = vmatpush1.bf16.msra.mxu0 %v2216
    %2352 = vmatprep.subr.bf16.mxu0 %v2215
    %2353 = vmatpush1.bf16.msra.mxu0 %v2214
    %2354 = vmatprep.subr.bf16.mxu0 %v2213
    %2355 = vmatpush1.bf16.msra.mxu0 %v2212
    %2356 = vmatprep.subr.bf16.mxu0 %v2243
    %2357 = vmatpush2.bf16.msra.mxu0 %v2242
    %2358 = vmatprep.subr.bf16.mxu0 %v2241
    %2359 = vmatpush2.bf16.msra.mxu0 %v2240
    %2360 = vmatprep.subr.bf16.mxu0 %v2239
    %2361 = vmatpush2.bf16.msra.mxu0 %v2238
    %2362 = vmatprep.subr.bf16.mxu0 %v2237
    %2363 = vmatpush2.bf16.msra.mxu0 %v2236
    %2364 = vmatprep.subr.bf16.mxu0 %v2235
    %2365 = vmatpush2.bf16.msra.mxu0 %v2234
    %2366 = vmatprep.subr.bf16.mxu0 %v2233
    %2367 = vmatpush2.bf16.msra.mxu0 %v2232
    %2368 = vmatprep.subr.bf16.mxu0 %v2231
    %2369 = vmatpush2.bf16.msra.mxu0 %v2230
    %2370 = vmatprep.subr.bf16.mxu0 %v2229
    %2371 = vmatpush2.bf16.msra.mxu0 %v2228
    %2372 = vmatprep.mubr.bf16.mxu0 %v1941
    %2373 = vmatmul.mubr.bf16.gmra.mxu0 %v1940
    %v2374 = vpop.f32.mrf.mxu0
    %v2375 = vadd.f32 %v2013, %v2374
    %v2376 = vpop.f32.mrf.mxu0
    %v2377 = vadd.f32 %v2017, %v2376
    %v2378 = vpop.f32.mrf.mxu0
    %v2379 = vpop.f32.mrf.mxu0
    %2380 = vdwg.mxu0
    %2381 = vmatprep.subr.bf16.mxu0 %v2259
    %2382 = vmatpush1.bf16.msra.mxu0 %v2258
    %2383 = vmatprep.subr.bf16.mxu0 %v2257
    %2384 = vmatpush1.bf16.msra.mxu0 %v2256
    %2385 = vmatprep.subr.bf16.mxu0 %v2255
    %2386 = vmatpush1.bf16.msra.mxu0 %v2254
    %2387 = vmatprep.subr.bf16.mxu0 %v2253
    %2388 = vmatpush1.bf16.msra.mxu0 %v2252
    %2389 = vmatprep.subr.bf16.mxu0 %v2251
    %2390 = vmatpush1.bf16.msra.mxu0 %v2250
    %2391 = vmatprep.subr.bf16.mxu0 %v2249
    %2392 = vmatpush1.bf16.msra.mxu0 %v2248
    %2393 = vmatprep.subr.bf16.mxu0 %v2247
    %2394 = vmatpush1.bf16.msra.mxu0 %v2246
    %2395 = vmatprep.subr.bf16.mxu0 %v2245
    %2396 = vmatpush1.bf16.msra.mxu0 %v2244
    %2397 = vmatprep.subr.bf16.mxu0 %v2275
    %2398 = vmatpush2.bf16.msra.mxu0 %v2274
    %2399 = vmatprep.subr.bf16.mxu0 %v2273
    %2400 = vmatpush2.bf16.msra.mxu0 %v2272
    %2401 = vmatprep.subr.bf16.mxu0 %v2271
    %2402 = vmatpush2.bf16.msra.mxu0 %v2270
    %2403 = vmatprep.subr.bf16.mxu0 %v2269
    %2404 = vmatpush2.bf16.msra.mxu0 %v2268
    %2405 = vmatprep.subr.bf16.mxu0 %v2267
    %2406 = vmatpush2.bf16.msra.mxu0 %v2266
    %2407 = vmatprep.subr.bf16.mxu0 %v2265
    %2408 = vmatpush2.bf16.msra.mxu0 %v2264
    %2409 = vmatprep.subr.bf16.mxu0 %v2263
    %2410 = vmatpush2.bf16.msra.mxu0 %v2262
    %2411 = vmatprep.subr.bf16.mxu0 %v2261
    %2412 = vmatpush2.bf16.msra.mxu0 %v2260
    %2413 = vmatprep.mubr.bf16.mxu0 %v1943
    %2414 = vmatmul.mubr.bf16.gmra.mxu0 %v1942
    %v2415 = vpop.f32.mrf.mxu0
    %v2416 = vadd.f32 %v2375, %v2415
    %v2417 = vpop.f32.mrf.mxu0
    %v2418 = vadd.f32 %v2377, %v2417
    %v2419 = vpop.f32.mrf.mxu0
    %v2420 = vpop.f32.mrf.mxu0
    %2421 = vdwg.mxu0
    %v2422 = vmax.f32 %v2416, 0.0
    %v2423 = vmax.f32 %v2418, 0.0
    %v2424 = vld [vmem:[%s13] sm:$0x3]
    %v2426 = vlaneseq
    %v2427 = vshrl.u32 %v2426, 7
    %v2428 = vsub.s32 0, %v2427
    %v2429 = vrot.slane %v2424, %v2428
    %v2430 = vlaneseq
    %v2431 = vshrl.u32 %v2430, 7
    %v2432 = vsub.s32 1, %v2431
    %v2433 = vrot.slane %v2424, %v2432
    %v2436 = vmul.f32 %v2422, %v2429
    %v2437 = vmul.f32 %v2423, %v2433
    %v2438 = vadd.f32 %v2436, %v2437
    %2439 = vadd.xlane.f32.xlu0 %v2438
    %v2440 = vpop.xlane.xlu0 %2439
    %v2441 = vld [vmem:[#allocation2] sm:$0x1]
    %v2443 = vlaneseq
    %v2444 = vshrl.u32 %v2443, 7
    %v2445 = vsub.s32 0, %v2444
    %v2446 = vrot.slane %v2441, %v2445
    %v2448 = vadd.f32 %v2440, %v2446
    %vm2449 = vcmask 7168
    %2450 = vst.msk [vmem:[%s15] sm:$0xff] %vm2449, %v2448
    // Predicated region
    $region98: #{tpu_custom_call.1} parent=1 // pred_check
      _
    $region99: #{tpu_custom_call.1} parent=1 // pred_check_branch
      %2452 = sbr.rel (0) target = $region101
    $region100: #{tpu_custom_call.1} parent=1 // pred_region
      _
    $region101: #{tpu_custom_call.1} parent=1 // pred_fallthru
      _
    // Predicated region
    $region102: #{tpu_custom_call.1} parent=1 // pred_check
      _
    $region103: #{tpu_custom_call.1} parent=1 // pred_check_branch
      %2454 = sbr.rel (0) target = $region105
    $region104: #{tpu_custom_call.1} parent=1 // pred_region
      _
    $region105: #{tpu_custom_call.1} parent=1 // pred_fallthru
      _
    %2455 = vsyncpa [#allocation4], 1
    %2456 = vsyncpa [#allocation6], 1
    %2457 = vsyncpa [#allocation9], 1
    %2458 = vsyncpa [#allocation12], 1
    %2459 = vsyncpa [#allocation15], 1

</llo_original>
